<compile_context>
chip_gen: v7x
topology: tpu7x:2x2x1
jax: 0.10.0
libtpu: 0.0.40
codegen_flags: <defaults>
</compile_context>

<pallas_src>
import functools

import jax
import jax.numpy as jnp
from jax.experimental import pallas as pl
from jax.experimental.pallas import tpu as pltpu

C_PAD = 128  # lane-dense channel width used for every layer inside the kernel


def _encoder_kernel(xc_ref, w1_ref, b1_ref, w2_ref, b2_ref, w3_ref, b3_ref,
                    out_ref):
    """One batch element per grid step.

    xc_ref : (Lout1, 128)   bf16  layer-1 im2col (built in the wrapper), zero-padded
    wi_ref : (Ki*128, 128)  bf16  flattened (tap, cin) x cout conv weights, zero-padded
    bi_ref : (1, 128)       f32   zero-padded biases
    out_ref: (1, 1, 128)    f32   global-max-pooled features for this sample
    """
    k2 = w2_ref.shape[0] // C_PAD
    k3 = w3_ref.shape[0] // C_PAD

    def conv_relu(cols, w_ref, b_ref):
        # One big MXU matmul per layer: bf16 x bf16 inputs, f32 accumulation.
        acc = jnp.dot(cols, w_ref[...], preferred_element_type=jnp.float32)
        return jnp.maximum(acc + b_ref[...], 0.0)            # (M, 128) f32

    def unfold(h, k):
        # im2col along the length axis: (L, 128) -> (L-k+1, k*128); col = tap*128 + c.
        lout = h.shape[0] - k + 1
        return jnp.concatenate([h[i:i + lout, :] for i in range(k)], axis=-1)

    h1 = conv_relu(xc_ref[...], w1_ref, b1_ref)                           # (L1, 128)
    h2 = conv_relu(unfold(h1.astype(jnp.bfloat16), k2), w2_ref, b2_ref)   # (L2, 128)
    h3 = conv_relu(unfold(h2.astype(jnp.bfloat16), k3), w3_ref, b3_ref)   # (L3, 128)

    # AdaptiveMaxPool1d(1) + squeeze == global max over the time axis.
    out_ref[...] = jnp.max(h3, axis=0, keepdims=True)[None]               # (1, 1, 128)


def _im2col(x, k):
    """x: (N, L, C) -> (N, L-k+1, k*C); column order = (tap, channel)."""
    lout = x.shape[1] - k + 1
    cols = jnp.stack([x[:, i:i + lout, :] for i in range(k)], axis=2)     # (N, Lout, K, C)
    return cols.reshape(x.shape[0], lout, k * x.shape[2])


def _prep_w(w, b, cin_pad, rows_pad=None):
    """PyTorch Conv1d params -> kernel layout.

    w: (Cout, Cin, K) -> bf16 (K*cin_pad [-> rows_pad], 128), row = tap*cin_pad + cin.
    b: (Cout,)        -> f32  (1, 128).
    """
    cout, cin, k = w.shape
    wk = jnp.transpose(w, (2, 1, 0))                                      # (K, Cin, Cout)
    wk = jnp.pad(wk, ((0, 0), (0, cin_pad - cin), (0, C_PAD - cout)))
    wf = wk.reshape(k * cin_pad, C_PAD)
    if rows_pad is not None and rows_pad > wf.shape[0]:
        wf = jnp.pad(wf, ((0, rows_pad - wf.shape[0]), (0, 0)))
    bf = jnp.pad(b.reshape(1, -1).astype(jnp.float32), ((0, 0), (0, C_PAD - cout)))
    return wf.astype(jnp.bfloat16), bf


@functools.partial(jax.jit, static_argnames=("num_out",))
def conv_encoder_forward(x_ncl, w1, b1, w2, b2, w3, b3, num_out=96):
    """Forward pass matching ConvolutionalEncoder.eval().

    x_ncl: (N, Cin, L) f32 (PyTorch NCL layout)
    wi:    (Cout_i, Cin_i, K_i) f32 (PyTorch Conv1d layout), bi: (Cout_i,) f32
    returns (N, num_out) f32
    """
    n, cin, _seq_len = x_ncl.shape
    k1 = w1.shape[2]
    lout1 = _seq_len - k1 + 1

    # Host-side (plain XLA) prep: NCL -> NLC, layer-1 im2col, pad the contraction dim
    # up to a multiple of 128 lanes, cast matmul inputs to bf16.
    x_nlc = jnp.transpose(x_ncl, (0, 2, 1))                               # (N, L, Cin)
    xc = _im2col(x_nlc, k1)                                               # (N, Lout1, K1*Cin)
    kc1 = xc.shape[-1]
    kc1_pad = ((kc1 + C_PAD - 1) // C_PAD) * C_PAD
    xc = jnp.pad(xc, ((0, 0), (0, 0), (0, kc1_pad - kc1))).astype(jnp.bfloat16)

    w1f, b1f = _prep_w(w1, b1, cin_pad=cin, rows_pad=kc1_pad)
    w2f, b2f = _prep_w(w2, b2, cin_pad=C_PAD)
    w3f, b3f = _prep_w(w3, b3, cin_pad=C_PAD)

    full = lambda a: pl.BlockSpec(a.shape, lambda i: (0,) * a.ndim)

    # TODO(synk): if L grows to many thousands, tile the length axis with a halo
    # (K-1 overlap) BlockSpec instead of one full-length block per sample.
    out = pl.pallas_call(
        _encoder_kernel,
        out_shape=jax.ShapeDtypeStruct((n, 1, C_PAD), jnp.float32),
        grid=(n,),
        in_specs=[
            # Batch dim squeezed: the kernel sees a 2-D (Lout1, 128) slab per sample.
            pl.BlockSpec((None, lout1, kc1_pad), lambda i: (i, 0, 0)),
            full(w1f), full(b1f), full(w2f), full(b2f), full(w3f), full(b3f),
        ],
        out_specs=pl.BlockSpec((1, 1, C_PAD), lambda i: (i, 0, 0)),
        compiler_params=pltpu.CompilerParams(
            dimension_semantics=("parallel",),   # independent samples -> 2nd TC on v7x
            vmem_limit_bytes=32 << 20,
        ),
    )(xc, w1f, b1f, w2f, b2f, w3f, b3f)

    return out.reshape(n, C_PAD)[:, :num_out]


def _init_conv_params(key, cin, cout, k):
    """Deterministic init mimicking PyTorch Conv1d default (uniform +-1/sqrt(fan_in))."""
    kw, kb = jax.random.split(key)
    bound = 1.0 / jnp.sqrt(cin * k)
    w = jax.random.uniform(kw, (cout, cin, k), jnp.float32, -bound, bound)  # PyTorch layout
    b = jax.random.uniform(kb, (cout,), jnp.float32, -bound, bound)
    return w, b


def _reference_forward(x_ncl, w1, b1, w2, b2, w3, b3):
    """Pure-JAX f32 reference (matches PyTorch eval-mode forward)."""
    def conv(x, w, b):  # x: (N, Cin, L), w: (Cout, Cin, K), b: (Cout,)
        y = jax.lax.conv_general_dilated(
            x, w, window_strides=(1,), padding="VALID",
            dimension_numbers=("NCH", "OIH", "NCH"))
        return jnp.maximum(y + b[None, :, None], 0.0)
    h = conv(x_ncl, w1, b1)
    h = conv(h, w2, b2)
    h = conv(h, w3, b3)
    return jnp.max(h, axis=2)


if __name__ == "__main__":
    num_channel, num_out = 4, 96
    N, L = 2, 64  # L must be >= 24 + 15 + 7 = 46 for valid convs

    root = jax.random.PRNGKey(0)
    kx, k1, k2, k3 = jax.random.split(root, 4)

    x_ncl = jax.random.normal(kx, (N, num_channel, L), jnp.float32)  # PyTorch NCL layout

    w1, b1 = _init_conv_params(k1, num_channel, 32, 24)
    w2, b2 = _init_conv_params(k2, 32, 64, 16)
    w3, b3 = _init_conv_params(k3, 64, num_out, 8)

    out = conv_encoder_forward(x_ncl, w1, b1, w2, b2, w3, b3, num_out=num_out)
    out = jax.block_until_ready(out)

    ref = _reference_forward(x_ncl, w1, b1, w2, b2, w3, b3)
    assert out.shape == (N, num_out)
    # bf16 matmul inputs (f32 accumulation) -> looser tolerance vs the f32 reference.
    assert jnp.allclose(out, ref, rtol=3e-2, atol=3e-2), "mismatch vs reference"

    print("KERNEL_OK")
</pallas_src>

<mosaic_0001>
module attributes {stable_mosaic.version = 11 : i64} {
  func.func @_encoder_kernel(%arg0: i32, %arg1: memref<1x41x128xbf16, #tpu.memory_space<vmem>>, %arg2: memref<128x128xbf16, #tpu.memory_space<vmem>>, %arg3: memref<1x128xf32, #tpu.memory_space<vmem>>, %arg4: memref<2048x128xbf16, #tpu.memory_space<vmem>>, %arg5: memref<1x128xf32, #tpu.memory_space<vmem>>, %arg6: memref<1024x128xbf16, #tpu.memory_space<vmem>>, %arg7: memref<1x128xf32, #tpu.memory_space<vmem>>, %arg8: memref<1x1x128xf32, #tpu.memory_space<vmem>>) attributes {dimension_semantics = [#tpu.dimension_semantics<parallel>], iteration_bounds = array<i64: 2>, scalar_prefetch = 0 : i64, scratch_operands = 0 : i64, tpu.core_type = #tpu.core_type<tc>, window_params = [{transform_indices = @transform_0, window_bounds = array<i64: 1, 41, 128>}, {pipeline_mode = #tpu.pipeline_mode<synchronous>, transform_indices = @transform_1, window_bounds = array<i64: 128, 128>}, {pipeline_mode = #tpu.pipeline_mode<synchronous>, transform_indices = @transform_2, window_bounds = array<i64: 1, 128>}, {pipeline_mode = #tpu.pipeline_mode<synchronous>, transform_indices = @transform_3, window_bounds = array<i64: 2048, 128>}, {pipeline_mode = #tpu.pipeline_mode<synchronous>, transform_indices = @transform_4, window_bounds = array<i64: 1, 128>}, {pipeline_mode = #tpu.pipeline_mode<synchronous>, transform_indices = @transform_5, window_bounds = array<i64: 1024, 128>}, {pipeline_mode = #tpu.pipeline_mode<synchronous>, transform_indices = @transform_6, window_bounds = array<i64: 1, 128>}, {transform_indices = @transform_7, window_bounds = array<i64: 1, 1, 128>}]} {
    %c0 = arith.constant 0 : index
    %c0_0 = arith.constant 0 : index
    %c0_1 = arith.constant 0 : index
    %0 = vector.load %arg1[%c0, %c0_0, %c0_1] : memref<1x41x128xbf16, #tpu.memory_space<vmem>>, vector<1x41x128xbf16>
    %1 = vector.shape_cast %0 : vector<1x41x128xbf16> to vector<41x128xbf16>
    %c0_2 = arith.constant 0 : index
    %c0_3 = arith.constant 0 : index
    %2 = vector.load %arg2[%c0_2, %c0_3] : memref<128x128xbf16, #tpu.memory_space<vmem>>, vector<128x128xbf16>
    %cst = arith.constant dense<0.000000e+00> : vector<41x128xf32>
    %3 = tpu.matmul %1, %2, %cst {dimension_numbers = #tpu.dot_dimension_numbers<[1], [0], [0], [1], [0, 0, 1, 1], [], []>} : vector<41x128xbf16>, vector<128x128xbf16>, vector<41x128xf32> -> vector<41x128xf32>
    %c0_4 = arith.constant 0 : index
    %c0_5 = arith.constant 0 : index
    %4 = vector.load %arg3[%c0_4, %c0_5] : memref<1x128xf32, #tpu.memory_space<vmem>>, vector<1x128xf32>
    %5 = vector.broadcast %4 : vector<1x128xf32> to vector<41x128xf32>
    %6 = arith.addf %3, %5 : vector<41x128xf32>
    %cst_6 = arith.constant 0.000000e+00 : f32
    %7 = vector.broadcast %cst_6 : f32 to vector<41x128xf32>
    %8 = arith.maximumf %6, %7 : vector<41x128xf32>
    %9 = arith.truncf %8 : vector<41x128xf32> to vector<41x128xbf16>
    %10 = vector.extract_strided_slice %9 {offsets = [0, 0], sizes = [26, 128], strides = [1, 1]} : vector<41x128xbf16> to vector<26x128xbf16>
    %11 = vector.extract_strided_slice %9 {offsets = [1, 0], sizes = [26, 128], strides = [1, 1]} : vector<41x128xbf16> to vector<26x128xbf16>
    %12 = vector.extract_strided_slice %9 {offsets = [2, 0], sizes = [26, 128], strides = [1, 1]} : vector<41x128xbf16> to vector<26x128xbf16>
    %13 = vector.extract_strided_slice %9 {offsets = [3, 0], sizes = [26, 128], strides = [1, 1]} : vector<41x128xbf16> to vector<26x128xbf16>
    %14 = vector.extract_strided_slice %9 {offsets = [4, 0], sizes = [26, 128], strides = [1, 1]} : vector<41x128xbf16> to vector<26x128xbf16>
    %15 = vector.extract_strided_slice %9 {offsets = [5, 0], sizes = [26, 128], strides = [1, 1]} : vector<41x128xbf16> to vector<26x128xbf16>
    %16 = vector.extract_strided_slice %9 {offsets = [6, 0], sizes = [26, 128], strides = [1, 1]} : vector<41x128xbf16> to vector<26x128xbf16>
    %17 = vector.extract_strided_slice %9 {offsets = [7, 0], sizes = [26, 128], strides = [1, 1]} : vector<41x128xbf16> to vector<26x128xbf16>
    %18 = vector.extract_strided_slice %9 {offsets = [8, 0], sizes = [26, 128], strides = [1, 1]} : vector<41x128xbf16> to vector<26x128xbf16>
    %19 = vector.extract_strided_slice %9 {offsets = [9, 0], sizes = [26, 128], strides = [1, 1]} : vector<41x128xbf16> to vector<26x128xbf16>
    %20 = vector.extract_strided_slice %9 {offsets = [10, 0], sizes = [26, 128], strides = [1, 1]} : vector<41x128xbf16> to vector<26x128xbf16>
    %21 = vector.extract_strided_slice %9 {offsets = [11, 0], sizes = [26, 128], strides = [1, 1]} : vector<41x128xbf16> to vector<26x128xbf16>
    %22 = vector.extract_strided_slice %9 {offsets = [12, 0], sizes = [26, 128], strides = [1, 1]} : vector<41x128xbf16> to vector<26x128xbf16>
    %23 = vector.extract_strided_slice %9 {offsets = [13, 0], sizes = [26, 128], strides = [1, 1]} : vector<41x128xbf16> to vector<26x128xbf16>
    %24 = vector.extract_strided_slice %9 {offsets = [14, 0], sizes = [26, 128], strides = [1, 1]} : vector<41x128xbf16> to vector<26x128xbf16>
    %25 = vector.extract_strided_slice %9 {offsets = [15, 0], sizes = [26, 128], strides = [1, 1]} : vector<41x128xbf16> to vector<26x128xbf16>
    %26 = tpu.concatenate %10, %11, %12, %13, %14, %15, %16, %17, %18, %19, %20, %21, %22, %23, %24, %25 in 1 : vector<26x128xbf16>, vector<26x128xbf16>, vector<26x128xbf16>, vector<26x128xbf16>, vector<26x128xbf16>, vector<26x128xbf16>, vector<26x128xbf16>, vector<26x128xbf16>, vector<26x128xbf16>, vector<26x128xbf16>, vector<26x128xbf16>, vector<26x128xbf16>, vector<26x128xbf16>, vector<26x128xbf16>, vector<26x128xbf16>, vector<26x128xbf16> -> vector<26x2048xbf16>
    %c0_7 = arith.constant 0 : index
    %c0_8 = arith.constant 0 : index
    %27 = vector.load %arg4[%c0_7, %c0_8] : memref<2048x128xbf16, #tpu.memory_space<vmem>>, vector<2048x128xbf16>
    %cst_9 = arith.constant dense<0.000000e+00> : vector<26x128xf32>
    %28 = tpu.matmul %26, %27, %cst_9 {dimension_numbers = #tpu.dot_dimension_numbers<[1], [0], [0], [1], [0, 0, 1, 1], [], []>} : vector<26x2048xbf16>, vector<2048x128xbf16>, vector<26x128xf32> -> vector<26x128xf32>
    %c0_10 = arith.constant 0 : index
    %c0_11 = arith.constant 0 : index
    %29 = vector.load %arg5[%c0_10, %c0_11] : memref<1x128xf32, #tpu.memory_space<vmem>>, vector<1x128xf32>
    %30 = vector.broadcast %29 : vector<1x128xf32> to vector<26x128xf32>
    %31 = arith.addf %28, %30 : vector<26x128xf32>
    %cst_12 = arith.constant 0.000000e+00 : f32
    %32 = vector.broadcast %cst_12 : f32 to vector<26x128xf32>
    %33 = arith.maximumf %31, %32 : vector<26x128xf32>
    %34 = arith.truncf %33 : vector<26x128xf32> to vector<26x128xbf16>
    %35 = vector.extract_strided_slice %34 {offsets = [0, 0], sizes = [19, 128], strides = [1, 1]} : vector<26x128xbf16> to vector<19x128xbf16>
    %36 = vector.extract_strided_slice %34 {offsets = [1, 0], sizes = [19, 128], strides = [1, 1]} : vector<26x128xbf16> to vector<19x128xbf16>
    %37 = vector.extract_strided_slice %34 {offsets = [2, 0], sizes = [19, 128], strides = [1, 1]} : vector<26x128xbf16> to vector<19x128xbf16>
    %38 = vector.extract_strided_slice %34 {offsets = [3, 0], sizes = [19, 128], strides = [1, 1]} : vector<26x128xbf16> to vector<19x128xbf16>
    %39 = vector.extract_strided_slice %34 {offsets = [4, 0], sizes = [19, 128], strides = [1, 1]} : vector<26x128xbf16> to vector<19x128xbf16>
    %40 = vector.extract_strided_slice %34 {offsets = [5, 0], sizes = [19, 128], strides = [1, 1]} : vector<26x128xbf16> to vector<19x128xbf16>
    %41 = vector.extract_strided_slice %34 {offsets = [6, 0], sizes = [19, 128], strides = [1, 1]} : vector<26x128xbf16> to vector<19x128xbf16>
    %42 = vector.extract_strided_slice %34 {offsets = [7, 0], sizes = [19, 128], strides = [1, 1]} : vector<26x128xbf16> to vector<19x128xbf16>
    %43 = tpu.concatenate %35, %36, %37, %38, %39, %40, %41, %42 in 1 : vector<19x128xbf16>, vector<19x128xbf16>, vector<19x128xbf16>, vector<19x128xbf16>, vector<19x128xbf16>, vector<19x128xbf16>, vector<19x128xbf16>, vector<19x128xbf16> -> vector<19x1024xbf16>
    %c0_13 = arith.constant 0 : index
    %c0_14 = arith.constant 0 : index
    %44 = vector.load %arg6[%c0_13, %c0_14] : memref<1024x128xbf16, #tpu.memory_space<vmem>>, vector<1024x128xbf16>
    %cst_15 = arith.constant dense<0.000000e+00> : vector<19x128xf32>
    %45 = tpu.matmul %43, %44, %cst_15 {dimension_numbers = #tpu.dot_dimension_numbers<[1], [0], [0], [1], [0, 0, 1, 1], [], []>} : vector<19x1024xbf16>, vector<1024x128xbf16>, vector<19x128xf32> -> vector<19x128xf32>
    %c0_16 = arith.constant 0 : index
    %c0_17 = arith.constant 0 : index
    %46 = vector.load %arg7[%c0_16, %c0_17] : memref<1x128xf32, #tpu.memory_space<vmem>>, vector<1x128xf32>
    %47 = vector.broadcast %46 : vector<1x128xf32> to vector<19x128xf32>
    %48 = arith.addf %45, %47 : vector<19x128xf32>
    %cst_18 = arith.constant 0.000000e+00 : f32
    %49 = vector.broadcast %cst_18 : f32 to vector<19x128xf32>
    %50 = arith.maximumf %48, %49 : vector<19x128xf32>
    %cst_19 = arith.constant dense<0xFF800000> : vector<128xf32>
    %51 = vector.multi_reduction <maximumf>, %50, %cst_19 [0] : vector<19x128xf32> to vector<128xf32>
    %52 = vector.shape_cast %51 : vector<128xf32> to vector<1x128xf32>
    %53 = vector.shape_cast %52 : vector<1x128xf32> to vector<1x1x128xf32>
    %c0_20 = arith.constant 0 : index
    %c0_21 = arith.constant 0 : index
    %c0_22 = arith.constant 0 : index
    %54 = vector.load %arg8[%c0_20, %c0_21, %c0_22] : memref<1x1x128xf32, #tpu.memory_space<vmem>>, vector<1x1x128xf32>
    tpu.vector_store %arg8[%c0_20, %c0_21, %c0_22], %53 {strides = array<i32>} : memref<1x1x128xf32, #tpu.memory_space<vmem>>, vector<1x1x128xf32>,
    return
  }
  func.func @transform_0(%arg0: i32) -> (i32, i32, i32) {
    %c0_i32 = arith.constant 0 : i32
    %c0_i32_0 = arith.constant 0 : i32
    %c0_i32_1 = arith.constant 0 : i32
    return %arg0, %c0_i32, %c0_i32_0 : i32, i32, i32
  }
  func.func @transform_1(%arg0: i32) -> (i32, i32) {
    %c0_i32 = arith.constant 0 : i32
    %c0_i32_0 = arith.constant 0 : i32
    %c0_i32_1 = arith.constant 0 : i32
    return %c0_i32, %c0_i32_0 : i32, i32
  }
  func.func @transform_2(%arg0: i32) -> (i32, i32) {
    %c0_i32 = arith.constant 0 : i32
    %c0_i32_0 = arith.constant 0 : i32
    %c0_i32_1 = arith.constant 0 : i32
    return %c0_i32, %c0_i32_0 : i32, i32
  }
  func.func @transform_3(%arg0: i32) -> (i32, i32) {
    %c0_i32 = arith.constant 0 : i32
    %c0_i32_0 = arith.constant 0 : i32
    %c0_i32_1 = arith.constant 0 : i32
    return %c0_i32, %c0_i32_0 : i32, i32
  }
  func.func @transform_4(%arg0: i32) -> (i32, i32) {
    %c0_i32 = arith.constant 0 : i32
    %c0_i32_0 = arith.constant 0 : i32
    %c0_i32_1 = arith.constant 0 : i32
    return %c0_i32, %c0_i32_0 : i32, i32
  }
  func.func @transform_5(%arg0: i32) -> (i32, i32) {
    %c0_i32 = arith.constant 0 : i32
    %c0_i32_0 = arith.constant 0 : i32
    %c0_i32_1 = arith.constant 0 : i32
    return %c0_i32, %c0_i32_0 : i32, i32
  }
  func.func @transform_6(%arg0: i32) -> (i32, i32) {
    %c0_i32 = arith.constant 0 : i32
    %c0_i32_0 = arith.constant 0 : i32
    %c0_i32_1 = arith.constant 0 : i32
    return %c0_i32, %c0_i32_0 : i32, i32
  }
  func.func @transform_7(%arg0: i32) -> (i32, i32, i32) {
    %c0_i32 = arith.constant 0 : i32
    %c0_i32_0 = arith.constant 0 : i32
    %c0_i32_1 = arith.constant 0 : i32
    return %arg0, %c0_i32, %c0_i32_0 : i32, i32, i32
  }
}

</mosaic_0001>

<llo_original>
// kernel: conv_encoder_forward.1
$region0: #{conv_encoder_forward.1}
  #allocation0 [shape = 'u32[]', space=smem, size = 0x4, offset = 0x4, fixed_abs, tag = 'smem constant byte address 0x4 - core index']
  #allocation1 [shape = 'u32[144,128]{1,0:T(1,128)}', space=vmem, size = 0x12000, scoped, tag = 'internal scratch']
  %s0 = inlined_call_operand.vmem [shape: bf16[2,41,128], index: 0, kind: input, shape index: {}]
  %s1 = inlined_call_operand.vmem [shape: bf16[128,128], index: 1, kind: input, shape index: {}]
  %s2 = inlined_call_operand.vmem [shape: f32[1,128], index: 2, kind: input, shape index: {}]
  %s3 = inlined_call_operand.vmem [shape: bf16[2048,128], index: 3, kind: input, shape index: {}]
  %s4 = inlined_call_operand.vmem [shape: f32[1,128], index: 4, kind: input, shape index: {}]
  %s5 = inlined_call_operand.vmem [shape: bf16[1024,128], index: 5, kind: input, shape index: {}]
  %s6 = inlined_call_operand.vmem [shape: f32[1,128], index: 6, kind: input, shape index: {}]
  %s7 = inlined_call_operand.hbm [shape: f32[2,1,128], index: 7, kind: output, shape index: {}]
  %s8 = sld [smem:[#allocation0]]
  $region61: #{conv_encoder_forward.1} parent=0
    _
  %s10 = ssub.s32 1, %s8
  %s11 = scalar_select 0, %s10, %s8
  $region1: #{conv_encoder_forward.1} parent=0
    #allocation2 [shape = 'u8[1024]{0}', space=vmem, size = 0x400, scoped, tag = 'output window, operand 0']
    #allocation3 [shape = 's32[2]{0}', space=sflag, size = 0x8, scoped, tag = 'scoped memory for conv_encoder_forward.1']
    %12 = vsyncpa [#allocation3], 0
    %s13 = scalar_lea.sflag [#allocation3], 1
    %14 = vsyncpa %s13, 0
    loop: start=0, step=1, limit=4
    $region2: #{conv_encoder_forward.1} parent=1 // loop_pre_header
      _
    $region3: #{conv_encoder_forward.1} parent=1 // loop_header
      %s16 = sphi 0, %s20
      %p17 = scmp.ge.s32.totalorder %s16, 4
      %s26 = sphi 0, %s28
      %s29 = sphi 0, %s26
      %s30 = sphi 0, %s29
      %s46 = sphi 0, %s30
      %s50 = sphi 0, %s50
      %s52 = sphi 0, %s50
      %s53 = sphi 0, %s52
      %s67 = sphi 0, %s53
      %s71 = sphi 0, %s71
      %s73 = sphi 0, %s71
      %s74 = sphi 0, %s73
      %s88 = sphi 0, %s74
      %s92 = sphi 0, %s92
      %s94 = sphi 0, %s92
      %s95 = sphi 0, %s94
      %s109 = sphi 0, %s95
      %s113 = sphi 0, %s113
      %s115 = sphi 0, %s113
      %s116 = sphi 0, %s115
      %s130 = sphi 0, %s116
      %s134 = sphi 0, %s134
      %s136 = sphi 0, %s134
      %s137 = sphi 0, %s136
      %s151 = sphi 0, %s137
      %s155 = sphi 0, %s155
      %s157 = sphi 0, %s155
      %s158 = sphi 0, %s157
      %s172 = sphi 0, %s158
      %s178 = sphi 0, %s180
      %s181 = sphi 0, %s178
      %s182 = sphi 0, %s181
      %s198 = sphi 0, %s182
    $region4: #{conv_encoder_forward.1} parent=1 // loop_header_branch
      %19 = sbr.rel (%p17) target = $region8
    $region5: #{conv_encoder_forward.1} parent=1 // loop_body
      %s21 = ssub.s32 %s16, 1
      %s22 = ssub.s32 %s16, 2
      %s23 = sadd.s32 %s16, 1
      %s24 = ssub.s32 %s16, %s23
      %p25 = scmp.eq.s32.totalorder %s24, 0
      %s27 = sadd.s32 %s26, 1
      %s28 = scalar_select %p25, %s26, %s27
      %p31 = pneg %p25
      %p32 = scmp.eq.s32.totalorder %s16, 1
      %p33 = por %p31, %p32
      %p34 = scmp.ne.s32.totalorder %s26, %s29
      %p35 = scmp.eq.s32.totalorder %s16, 0
      %p36 = por %p34, %p35
      %p37 = scmp.ne.s32.totalorder %s26, %s29
      %p38 = scmp.eq.s32.totalorder %s21, 1
      %p39 = por %p37, %p38
      %p40 = scmp.ne.s32.totalorder %s29, %s30
      %p41 = scmp.eq.s32.totalorder %s21, 0
      %p42 = por %p40, %p41
      %p43 = scmp.ne.s32.totalorder %s29, %s30
      %p44 = scmp.eq.s32.totalorder %s22, 1
      %p45 = por %p43, %p44
      %p47 = scmp.ne.s32.totalorder %s30, %s46
      %p48 = scmp.eq.s32.totalorder %s22, 0
      %p49 = por %p47, %p48
      %s51 = sadd.s32 %s50, 1
      %p54 = scmp.eq.s32.totalorder %s16, 1
      %p55 = scmp.ne.s32.totalorder %s50, %s52
      %p56 = scmp.eq.s32.totalorder %s16, 0
      %p57 = por %p55, %p56
      %p58 = scmp.ne.s32.totalorder %s50, %s52
      %p59 = scmp.eq.s32.totalorder %s21, 1
      %p60 = por %p58, %p59
      %p61 = scmp.ne.s32.totalorder %s52, %s53
      %p62 = scmp.eq.s32.totalorder %s21, 0
      %p63 = por %p61, %p62
      %p64 = scmp.ne.s32.totalorder %s52, %s53
      %p65 = scmp.eq.s32.totalorder %s22, 1
      %p66 = por %p64, %p65
      %p68 = scmp.ne.s32.totalorder %s53, %s67
      %p69 = scmp.eq.s32.totalorder %s22, 0
      %p70 = por %p68, %p69
      %s72 = sadd.s32 %s71, 1
      %p75 = scmp.eq.s32.totalorder %s16, 1
      %p76 = scmp.ne.s32.totalorder %s71, %s73
      %p77 = scmp.eq.s32.totalorder %s16, 0
      %p78 = por %p76, %p77
      %p79 = scmp.ne.s32.totalorder %s71, %s73
      %p80 = scmp.eq.s32.totalorder %s21, 1
      %p81 = por %p79, %p80
      %p82 = scmp.ne.s32.totalorder %s73, %s74
      %p83 = scmp.eq.s32.totalorder %s21, 0
      %p84 = por %p82, %p83
      %p85 = scmp.ne.s32.totalorder %s73, %s74
      %p86 = scmp.eq.s32.totalorder %s22, 1
      %p87 = por %p85, %p86
      %p89 = scmp.ne.s32.totalorder %s74, %s88
      %p90 = scmp.eq.s32.totalorder %s22, 0
      %p91 = por %p89, %p90
      %s93 = sadd.s32 %s92, 1
      %p96 = scmp.eq.s32.totalorder %s16, 1
      %p97 = scmp.ne.s32.totalorder %s92, %s94
      %p98 = scmp.eq.s32.totalorder %s16, 0
      %p99 = por %p97, %p98
      %p100 = scmp.ne.s32.totalorder %s92, %s94
      %p101 = scmp.eq.s32.totalorder %s21, 1
      %p102 = por %p100, %p101
      %p103 = scmp.ne.s32.totalorder %s94, %s95
      %p104 = scmp.eq.s32.totalorder %s21, 0
      %p105 = por %p103, %p104
      %p106 = scmp.ne.s32.totalorder %s94, %s95
      %p107 = scmp.eq.s32.totalorder %s22, 1
      %p108 = por %p106, %p107
      %p110 = scmp.ne.s32.totalorder %s95, %s109
      %p111 = scmp.eq.s32.totalorder %s22, 0
      %p112 = por %p110, %p111
      %s114 = sadd.s32 %s113, 1
      %p117 = scmp.eq.s32.totalorder %s16, 1
      %p118 = scmp.ne.s32.totalorder %s113, %s115
      %p119 = scmp.eq.s32.totalorder %s16, 0
      %p120 = por %p118, %p119
      %p121 = scmp.ne.s32.totalorder %s113, %s115
      %p122 = scmp.eq.s32.totalorder %s21, 1
      %p123 = por %p121, %p122
      %p124 = scmp.ne.s32.totalorder %s115, %s116
      %p125 = scmp.eq.s32.totalorder %s21, 0
      %p126 = por %p124, %p125
      %p127 = scmp.ne.s32.totalorder %s115, %s116
      %p128 = scmp.eq.s32.totalorder %s22, 1
      %p129 = por %p127, %p128
      %p131 = scmp.ne.s32.totalorder %s116, %s130
      %p132 = scmp.eq.s32.totalorder %s22, 0
      %p133 = por %p131, %p132
      %s135 = sadd.s32 %s134, 1
      %p138 = scmp.eq.s32.totalorder %s16, 1
      %p139 = scmp.ne.s32.totalorder %s134, %s136
      %p140 = scmp.eq.s32.totalorder %s16, 0
      %p141 = por %p139, %p140
      %p142 = scmp.ne.s32.totalorder %s134, %s136
      %p143 = scmp.eq.s32.totalorder %s21, 1
      %p144 = por %p142, %p143
      %p145 = scmp.ne.s32.totalorder %s136, %s137
      %p146 = scmp.eq.s32.totalorder %s21, 0
      %p147 = por %p145, %p146
      %p148 = scmp.ne.s32.totalorder %s136, %s137
      %p149 = scmp.eq.s32.totalorder %s22, 1
      %p150 = por %p148, %p149
      %p152 = scmp.ne.s32.totalorder %s137, %s151
      %p153 = scmp.eq.s32.totalorder %s22, 0
      %p154 = por %p152, %p153
      %s156 = sadd.s32 %s155, 1
      %p159 = scmp.eq.s32.totalorder %s16, 1
      %p160 = scmp.ne.s32.totalorder %s155, %s157
      %p161 = scmp.eq.s32.totalorder %s16, 0
      %p162 = por %p160, %p161
      %p163 = scmp.ne.s32.totalorder %s155, %s157
      %p164 = scmp.eq.s32.totalorder %s21, 1
      %p165 = por %p163, %p164
      %p166 = scmp.ne.s32.totalorder %s157, %s158
      %p167 = scmp.eq.s32.totalorder %s21, 0
      %p168 = por %p166, %p167
      %p169 = scmp.ne.s32.totalorder %s157, %s158
      %p170 = scmp.eq.s32.totalorder %s22, 1
      %p171 = por %p169, %p170
      %p173 = scmp.ne.s32.totalorder %s158, %s172
      %p174 = scmp.eq.s32.totalorder %s22, 0
      %p175 = por %p173, %p174
      %s176 = ssub.s32 %s16, %s23
      %p177 = scmp.eq.s32.totalorder %s176, 0
      %s179 = sadd.s32 %s178, 1
      %s180 = scalar_select %p177, %s178, %s179
      %p183 = pneg %p177
      %p184 = scmp.eq.s32.totalorder %s16, 1
      %p185 = por %p183, %p184
      %p186 = scmp.ne.s32.totalorder %s178, %s181
      %p187 = scmp.eq.s32.totalorder %s16, 0
      %p188 = por %p186, %p187
      %p189 = scmp.ne.s32.totalorder %s178, %s181
      %p190 = scmp.eq.s32.totalorder %s21, 1
      %p191 = por %p189, %p190
      %p192 = scmp.ne.s32.totalorder %s181, %s182
      %p193 = scmp.eq.s32.totalorder %s21, 0
      %p194 = por %p192, %p193
      %p195 = scmp.ne.s32.totalorder %s181, %s182
      %p196 = scmp.eq.s32.totalorder %s22, 1
      %p197 = por %p195, %p196
      %p199 = scmp.ne.s32.totalorder %s182, %s198
      %p200 = scmp.eq.s32.totalorder %s22, 0
      %p201 = por %p199, %p200
      %p202 = scmp.le.s32.totalorder 1, %s16
      %p203 = scmp.lt.s32.totalorder %s16, 3
      %p204 = pnand %p202, %p203
      %p205 = pneg %p204
      // Predicated region
      $region9: #{conv_encoder_forward.1} parent=5 // pred_check
        _
      $region10: #{conv_encoder_forward.1} parent=5 // pred_check_branch
        %207 = sbr.rel (%p204) target = $region12
      $region11: #{conv_encoder_forward.1} parent=5 // pred_region
        %s208 = ssub.s32 %s16, 1
        // Predicated region
        $region13: #{conv_encoder_forward.1} parent=11 // pred_check
          %p209 = pneg %p63
        $region14: #{conv_encoder_forward.1} parent=11 // pred_check_branch
          %211 = sbr.rel (%p209) target = $region16
        $region15: #{conv_encoder_forward.1} parent=11 // pred_region
          _
        $region16: #{conv_encoder_forward.1} parent=11 // pred_fallthru
          _
        // Predicated region
        $region17: #{conv_encoder_forward.1} parent=11 // pred_check
          %p212 = pneg %p84
        $region18: #{conv_encoder_forward.1} parent=11 // pred_check_branch
          %214 = sbr.rel (%p212) target = $region20
        $region19: #{conv_encoder_forward.1} parent=11 // pred_region
          _
        $region20: #{conv_encoder_forward.1} parent=11 // pred_fallthru
          _
        // Predicated region
        $region21: #{conv_encoder_forward.1} parent=11 // pred_check
          %p215 = pneg %p105
        $region22: #{conv_encoder_forward.1} parent=11 // pred_check_branch
          %217 = sbr.rel (%p215) target = $region24
        $region23: #{conv_encoder_forward.1} parent=11 // pred_region
          _
        $region24: #{conv_encoder_forward.1} parent=11 // pred_fallthru
          _
        // Predicated region
        $region25: #{conv_encoder_forward.1} parent=11 // pred_check
          %p218 = pneg %p126
        $region26: #{conv_encoder_forward.1} parent=11 // pred_check_branch
          %220 = sbr.rel (%p218) target = $region28
        $region27: #{conv_encoder_forward.1} parent=11 // pred_region
          _
        $region28: #{conv_encoder_forward.1} parent=11 // pred_fallthru
          _
        // Predicated region
        $region29: #{conv_encoder_forward.1} parent=11 // pred_check
          %p221 = pneg %p147
        $region30: #{conv_encoder_forward.1} parent=11 // pred_check_branch
          %223 = sbr.rel (%p221) target = $region32
        $region31: #{conv_encoder_forward.1} parent=11 // pred_region
          _
        $region32: #{conv_encoder_forward.1} parent=11 // pred_fallthru
          _
        // Predicated region
        $region33: #{conv_encoder_forward.1} parent=11 // pred_check
          %p224 = pneg %p168
        $region34: #{conv_encoder_forward.1} parent=11 // pred_check_branch
          %226 = sbr.rel (%p224) target = $region36
        $region35: #{conv_encoder_forward.1} parent=11 // pred_region
          _
        $region36: #{conv_encoder_forward.1} parent=11 // pred_fallthru
          _
      $region12: #{conv_encoder_forward.1} parent=5 // pred_fallthru
        _
      %p227 = scmp.lt.s32.totalorder %s16, 2
      // Predicated region
      $region37: #{conv_encoder_forward.1} parent=5 // pred_check
        %p228 = pneg %p227
      $region38: #{conv_encoder_forward.1} parent=5 // pred_check_branch
        %230 = sbr.rel (%p228) target = $region40
      $region39: #{conv_encoder_forward.1} parent=5 // pred_region
        // Predicated region
        $region41: #{conv_encoder_forward.1} parent=39 // pred_check
          %p231 = pneg %p36
        $region42: #{conv_encoder_forward.1} parent=39 // pred_check_branch
          %233 = sbr.rel (%p231) target = $region44
        $region43: #{conv_encoder_forward.1} parent=39 // pred_region
          %p234 = scmp.lt.s32.totalorder %s16, 1
          %s235 = scalar_select %p234, %s16, 1
          %s236 = smul.addr %s235, 6
          %s237 = smul.addr %s236, 4
          %s238 = scalar_lea.vmem %s0, %s237
        $region44: #{conv_encoder_forward.1} parent=39 // pred_fallthru
          _
      $region40: #{conv_encoder_forward.1} parent=5 // pred_fallthru
        _
      %p239 = scmp.le.s32.totalorder 1, %s16
      %p240 = scmp.lt.s32.totalorder %s16, 3
      %p241 = pnand %p239, %p240
      %p242 = pneg %p241
      // Predicated region
      $region45: #{conv_encoder_forward.1} parent=5 // pred_check
        _
      $region46: #{conv_encoder_forward.1} parent=5 // pred_check_branch
        %244 = sbr.rel (%p241) target = $region48
      $region47: #{conv_encoder_forward.1} parent=5 // pred_region
        %s245 = ssub.s32 %s16, 1
        %p246 = scmp.lt.s32.totalorder %s21, 1
        %s247 = scalar_select %p246, %s21, 1
        %s248 = smul.addr %s247, 6
        %s249 = smul.addr %s248, 4
        %s250 = scalar_lea.vmem %s0, %s249
        %p251 = pneg %p42
        %p252 = pneg %p39
        %p253 = pneg %p63
        %p254 = pneg %p60
        %p255 = pneg %p84
        %p256 = pneg %p81
        %p257 = pneg %p105
        %p258 = pneg %p102
        %p259 = pneg %p126
        %p260 = pneg %p123
        %p261 = pneg %p147
        %p262 = pneg %p144
        %p263 = pneg %p168
        %p264 = pneg %p165
        %p265 = pneg %p194
        %p266 = pneg %p191
        %s267 = sand.u32 %s181, 1
        %s268 = scalar_lea.sflag [#allocation3], %s267
        %s269 = sand.u32 %s181, 1
        %s270 = scalar_lea.vmem [#allocation2], %s269
        %p271 = scmp.lt.s32.totalorder %s21, 1
        %s272 = scalar_select %p271, %s21, 1
        %s273 = smul.addr %s272, 6
        %s274 = smul.addr %s273, 4
        %s275 = scalar_lea.vmem %s0, %s274
        %v277 = vld [vmem:[%s275] sm:$0xf]
        %v278 = vld [vmem:[%s275 + $0x4] sm:$0xf]
        %v279 = vld [vmem:[%s275 + $0x8] sm:$0xf]
        %v280 = vld [vmem:[%s275 + $0xc] sm:$0xf]
        %v281 = vld [vmem:[%s275 + $0x10] sm:$0xf]
        %v282 = vld [vmem:[%s275 + $0x14] sm:$0x1]
        %v283 = vld [vmem:[%s1] sm:$0xf]
        %v284 = vld [vmem:[%s1 + $0x4] sm:$0xf]
        %v285 = vld [vmem:[%s1 + $0x8] sm:$0xf]
        %v286 = vld [vmem:[%s1 + $0xc] sm:$0xf]
        %v287 = vld [vmem:[%s1 + $0x10] sm:$0xf]
        %v288 = vld [vmem:[%s1 + $0x14] sm:$0xf]
        %v289 = vld [vmem:[%s1 + $0x18] sm:$0xf]
        %v290 = vld [vmem:[%s1 + $0x1c] sm:$0xf]
        %v291 = vld [vmem:[%s1 + $0x20] sm:$0xf]
        %v292 = vld [vmem:[%s1 + $0x24] sm:$0xf]
        %v293 = vld [vmem:[%s1 + $0x28] sm:$0xf]
        %v294 = vld [vmem:[%s1 + $0x2c] sm:$0xf]
        %v295 = vld [vmem:[%s1 + $0x30] sm:$0xf]
        %v296 = vld [vmem:[%s1 + $0x34] sm:$0xf]
        %v297 = vld [vmem:[%s1 + $0x38] sm:$0xf]
        %v298 = vld [vmem:[%s1 + $0x3c] sm:$0xf]
        %v299 = vld [vmem:[%s2] sm:$0x1]
        %v301 = vlaneseq
        %v302 = vshrl.u32 %v301, 7
        %v303 = vsub.s32 0, %v302
        %v304 = vrot.slane %v299, %v303
        %v312 = vunpack.c.l.b16 %v277
        %v313 = vunpack.c.l.b16 %v278
        %v314 = vunpack.c.l.b16 %v279
        %v315 = vunpack.c.l.b16 %v280
        %v316 = vunpack.c.l.b16 %v281
        %v317 = vunpack.c.l.b16 %v282
        %v318 = vpack.c.b16 %v313, %v312
        %v319 = vpack.c.b16 %v315, %v314
        %v320 = vpack.c.b16 %v317, %v316
        %v340 = vunpack.c.l.b16 %v283
        %v341 = vunpack.c.l.b16 %v284
        %v342 = vunpack.c.l.b16 %v285
        %v343 = vunpack.c.l.b16 %v286
        %v344 = vunpack.c.l.b16 %v287
        %v345 = vunpack.c.l.b16 %v288
        %v346 = vunpack.c.l.b16 %v289
        %v347 = vunpack.c.l.b16 %v290
        %v348 = vunpack.c.l.b16 %v291
        %v349 = vunpack.c.l.b16 %v292
        %v350 = vunpack.c.l.b16 %v293
        %v351 = vunpack.c.l.b16 %v294
        %v352 = vunpack.c.l.b16 %v295
        %v353 = vunpack.c.l.b16 %v296
        %v354 = vunpack.c.l.b16 %v297
        %v355 = vunpack.c.l.b16 %v298
        %v356 = vpack.c.b16 %v341, %v340
        %v357 = vpack.c.b16 %v343, %v342
        %v358 = vpack.c.b16 %v345, %v344
        %v359 = vpack.c.b16 %v347, %v346
        %v360 = vpack.c.b16 %v349, %v348
        %v361 = vpack.c.b16 %v351, %v350
        %v362 = vpack.c.b16 %v353, %v352
        %v363 = vpack.c.b16 %v355, %v354
        %372 = vmatprep.subr.bf16.mxu0 0
        %373 = vmatpush1.bf16.msra.mxu0 %v356
        %374 = vmatprep.subr.bf16.mxu0 0
        %375 = vmatpush1.bf16.msra.mxu0 %v357
        %376 = vmatprep.subr.bf16.mxu0 0
        %377 = vmatpush1.bf16.msra.mxu0 %v358
        %378 = vmatprep.subr.bf16.mxu0 0
        %379 = vmatpush1.bf16.msra.mxu0 %v359
        %380 = vmatprep.subr.bf16.mxu0 0
        %381 = vmatpush1.bf16.msra.mxu0 %v360
        %382 = vmatprep.subr.bf16.mxu0 0
        %383 = vmatpush1.bf16.msra.mxu0 %v361
        %384 = vmatprep.subr.bf16.mxu0 0
        %385 = vmatpush1.bf16.msra.mxu0 %v362
        %386 = vmatprep.subr.bf16.mxu0 0
        %387 = vmatpush1.bf16.msra.mxu0 %v363
        %388 = vmatprep.subr.bf16.mxu0 0
        %389 = vmatpush1.bf16.msra.mxu0 0
        %390 = vmatprep.subr.bf16.mxu0 0
        %391 = vmatpush1.bf16.msra.mxu0 0
        %392 = vmatprep.subr.bf16.mxu0 0
        %393 = vmatpush1.bf16.msra.mxu0 0
        %394 = vmatprep.subr.bf16.mxu0 0
        %395 = vmatpush1.bf16.msra.mxu0 0
        %396 = vmatprep.subr.bf16.mxu0 0
        %397 = vmatpush1.bf16.msra.mxu0 0
        %398 = vmatprep.subr.bf16.mxu0 0
        %399 = vmatpush1.bf16.msra.mxu0 0
        %400 = vmatprep.subr.bf16.mxu0 0
        %401 = vmatpush1.bf16.msra.mxu0 0
        %402 = vmatprep.subr.bf16.mxu0 0
        %403 = vmatpush1.bf16.msra.mxu0 0
        %404 = vmatprep.mubr.bf16.mxu0 0
        %405 = vmatmul.mubr.bf16.gmra.mrb[0].mxu0 %v318
        %v406 = vpop.f32.mrb[0].mxu0
        %v407 = vadd.f32 %v304, %v406
        %v408 = vpop.f32.mrb[0].mxu0
        %v409 = vpop.f32.mrb[0].mxu0
        %v410 = vadd.f32 %v304, %v409
        %v411 = vpop.f32.mrb[0].mxu0
        %412 = vmatprep.mubr.bf16.mxu0 0
        %413 = vmatmul.mubr.bf16.gmra.mrb[0].mxu0 %v319
        %v414 = vpop.f32.mrb[0].mxu0
        %v415 = vadd.f32 %v304, %v414
        %v416 = vpop.f32.mrb[0].mxu0
        %v417 = vpop.f32.mrb[0].mxu0
        %v418 = vadd.f32 %v304, %v417
        %v419 = vpop.f32.mrb[0].mxu0
        %420 = vmatprep.mubr.bf16.mxu0 0
        %421 = vmatmul.mubr.bf16.gmra.mrb[0].mxu0 %v320
        %v422 = vpop.f32.mrb[0].mxu0
        %v423 = vadd.f32 %v304, %v422
        %v424 = vpop.f32.mrb[0].mxu0
        %v425 = vpop.f32.mrb[0].mxu0
        %v426 = vadd.f32 %v304, %v425
        %v427 = vpop.f32.mrb[0].mxu0
        %428 = vdwg.mxu0
        %v429 = vmax.f32 %v407, 0.0
        %v430 = vmax.f32 %v410, 0.0
        %v431 = vmax.f32 %v415, 0.0
        %v432 = vmax.f32 %v418, 0.0
        %v433 = vmax.f32 %v423, 0.0
        %v434 = vmax.f32 %v426, 0.0
        %v435 = vpack.c.bf16 %v430, %v429
        %v436 = vpack.c.bf16 %v432, %v431
        %v437 = vpack.c.bf16 %v434, %v433
        %vm438 = vsmask.f32 7424
        %v440 = vshrl.u32 %v435, 16
        %v442 = vshll.u32 %v435, 16
        %v444 = vrot.slane %v442, 1
        %v445 = vor.u32 %v440, %v444
        %v447 = vshll.u32 %v436, 16
        %v449 = vrot.slane %v447, 1
        %v450 = vsel %vm438, %v445, %v449
        %v451 = vshrl.u32 %v436, 16
        %v453 = vor.u32 %v451, %v449
        %vm458 = vcmask 1046528
        %v459 = vrot.slane %v435, 1
        %v460 = vrot.slane %v436, 1
        %v461 = vsel %vm458, %v459, %v460
        %vm464 = vsmask.f32 6400
        %v465 = vrot.slane %v440, 1
        %v466 = vrot.slane %v442, 2
        %v467 = vor.u32 %v465, %v466
        %v468 = vrot.slane %v451, 1
        %v469 = vrot.slane %v447, 2
        %v470 = vor.u32 %v468, %v469
        %v471 = vsel %vm464, %v467, %v470
        %vm474 = vcmask 1045504
        %v475 = vrot.slane %v435, 2
        %v476 = vrot.slane %v436, 2
        %v477 = vsel %vm474, %v475, %v476
        %vm480 = vsmask.f32 5376
        %v481 = vrot.slane %v440, 2
        %v482 = vrot.slane %v442, 3
        %v483 = vor.u32 %v481, %v482
        %v484 = vrot.slane %v451, 2
        %v485 = vrot.slane %v447, 3
        %v486 = vor.u32 %v484, %v485
        %v487 = vsel %vm480, %v483, %v486
        %vm490 = vcmask 1044480
        %v491 = vrot.slane %v435, 3
        %v492 = vrot.slane %v436, 3
        %v493 = vsel %vm490, %v491, %v492
        %vm496 = vsmask.f32 4352
        %v497 = vrot.slane %v440, 3
        %v498 = vrot.slane %v442, 4
        %v499 = vor.u32 %v497, %v498
        %v500 = vrot.slane %v451, 3
        %v501 = vrot.slane %v447, 4
        %v502 = vor.u32 %v500, %v501
        %v503 = vsel %vm496, %v499, %v502
        %v505 = vshll.u32 %v437, 16
        %v507 = vrot.slane %v505, 4
        %v508 = vsel %vm496, %v502, %v507
        %vm512 = vcmask 1043456
        %v513 = vrot.slane %v435, 4
        %v514 = vrot.slane %v436, 4
        %v515 = vsel %vm512, %v513, %v514
        %v516 = vrot.slane %v437, 4
        %v517 = vsel %vm512, %v514, %v516
        %vm520 = vsmask.f32 3328
        %v521 = vrot.slane %v440, 4
        %v522 = vrot.slane %v442, 5
        %v523 = vor.u32 %v521, %v522
        %v524 = vrot.slane %v451, 4
        %v525 = vrot.slane %v447, 5
        %v526 = vor.u32 %v524, %v525
        %v527 = vsel %vm520, %v523, %v526
        %v528 = vshrl.u32 %v437, 16
        %v530 = vrot.slane %v528, 4
        %v531 = vrot.slane %v505, 5
        %v532 = vor.u32 %v530, %v531
        %v533 = vsel %vm520, %v526, %v532
        %vm536 = vcmask 1042432
        %v537 = vrot.slane %v435, 5
        %v538 = vrot.slane %v436, 5
        %v539 = vsel %vm536, %v537, %v538
        %v540 = vrot.slane %v437, 5
        %v541 = vsel %vm536, %v538, %v540
        %vm544 = vsmask.f32 2304
        %v545 = vrot.slane %v440, 5
        %v546 = vrot.slane %v442, 6
        %v547 = vor.u32 %v545, %v546
        %v548 = vrot.slane %v451, 5
        %v549 = vrot.slane %v447, 6
        %v550 = vor.u32 %v548, %v549
        %v551 = vsel %vm544, %v547, %v550
        %v552 = vrot.slane %v528, 5
        %v553 = vrot.slane %v505, 6
        %v554 = vor.u32 %v552, %v553
        %v555 = vsel %vm544, %v550, %v554
        %vm558 = vcmask 1041408
        %v559 = vrot.slane %v435, 6
        %v560 = vrot.slane %v436, 6
        %v561 = vsel %vm558, %v559, %v560
        %v562 = vrot.slane %v437, 6
        %v563 = vsel %vm558, %v560, %v562
        %vm566 = vsmask.f32 1280
        %v567 = vrot.slane %v440, 6
        %v568 = vrot.slane %v442, 7
        %v569 = vor.u32 %v567, %v568
        %v570 = vrot.slane %v451, 6
        %v571 = vrot.slane %v447, 7
        %v572 = vor.u32 %v570, %v571
        %v573 = vsel %vm566, %v569, %v572
        %v574 = vrot.slane %v528, 6
        %v575 = vrot.slane %v505, 7
        %v576 = vor.u32 %v574, %v575
        %v577 = vsel %vm566, %v572, %v576
        %vm580 = vcmask 1040384
        %v581 = vrot.slane %v435, 7
        %v582 = vrot.slane %v436, 7
        %v583 = vsel %vm580, %v581, %v582
        %v584 = vrot.slane %v437, 7
        %v585 = vsel %vm580, %v582, %v584
        %vm588 = vsmask.f32 256
        %v589 = vrot.slane %v440, 7
        %v590 = vrot.slane %v451, 7
        %v591 = vor.u32 %v590, %v447
        %v592 = vsel %vm588, %v589, %v591
        %v593 = vrot.slane %v528, 7
        %v594 = vor.u32 %v593, %v505
        %v595 = vsel %vm588, %v590, %v594
        %v598 = vld [vmem:[%s3] sm:$0xf]
        %v599 = vld [vmem:[%s3 + $0x4] sm:$0xf]
        %v600 = vld [vmem:[%s3 + $0x8] sm:$0xf]
        %v601 = vld [vmem:[%s3 + $0xc] sm:$0xf]
        %v602 = vld [vmem:[%s3 + $0x10] sm:$0xf]
        %v603 = vld [vmem:[%s3 + $0x14] sm:$0xf]
        %v604 = vld [vmem:[%s3 + $0x18] sm:$0xf]
        %v605 = vld [vmem:[%s3 + $0x1c] sm:$0xf]
        %v606 = vld [vmem:[%s3 + $0x20] sm:$0xf]
        %v607 = vld [vmem:[%s3 + $0x24] sm:$0xf]
        %v608 = vld [vmem:[%s3 + $0x28] sm:$0xf]
        %v609 = vld [vmem:[%s3 + $0x2c] sm:$0xf]
        %v610 = vld [vmem:[%s3 + $0x30] sm:$0xf]
        %v611 = vld [vmem:[%s3 + $0x34] sm:$0xf]
        %v612 = vld [vmem:[%s3 + $0x38] sm:$0xf]
        %v613 = vld [vmem:[%s3 + $0x3c] sm:$0xf]
        %v614 = vld [vmem:[%s3 + $0x40] sm:$0xf]
        %v615 = vld [vmem:[%s3 + $0x44] sm:$0xf]
        %v616 = vld [vmem:[%s3 + $0x48] sm:$0xf]
        %v617 = vld [vmem:[%s3 + $0x4c] sm:$0xf]
        %v618 = vld [vmem:[%s3 + $0x50] sm:$0xf]
        %v619 = vld [vmem:[%s3 + $0x54] sm:$0xf]
        %v620 = vld [vmem:[%s3 + $0x58] sm:$0xf]
        %v621 = vld [vmem:[%s3 + $0x5c] sm:$0xf]
        %v622 = vld [vmem:[%s3 + $0x60] sm:$0xf]
        %v623 = vld [vmem:[%s3 + $0x64] sm:$0xf]
        %v624 = vld [vmem:[%s3 + $0x68] sm:$0xf]
        %v625 = vld [vmem:[%s3 + $0x6c] sm:$0xf]
        %v626 = vld [vmem:[%s3 + $0x70] sm:$0xf]
        %v627 = vld [vmem:[%s3 + $0x74] sm:$0xf]
        %v628 = vld [vmem:[%s3 + $0x78] sm:$0xf]
        %v629 = vld [vmem:[%s3 + $0x7c] sm:$0xf]
        %v630 = vld [vmem:[%s3 + $0x80] sm:$0xf]
        %v631 = vld [vmem:[%s3 + $0x84] sm:$0xf]
        %v632 = vld [vmem:[%s3 + $0x88] sm:$0xf]
        %v633 = vld [vmem:[%s3 + $0x8c] sm:$0xf]
        %v634 = vld [vmem:[%s3 + $0x90] sm:$0xf]
        %v635 = vld [vmem:[%s3 + $0x94] sm:$0xf]
        %v636 = vld [vmem:[%s3 + $0x98] sm:$0xf]
        %v637 = vld [vmem:[%s3 + $0x9c] sm:$0xf]
        %v638 = vld [vmem:[%s3 + $0xa0] sm:$0xf]
        %v639 = vld [vmem:[%s3 + $0xa4] sm:$0xf]
        %v640 = vld [vmem:[%s3 + $0xa8] sm:$0xf]
        %v641 = vld [vmem:[%s3 + $0xac] sm:$0xf]
        %v642 = vld [vmem:[%s3 + $0xb0] sm:$0xf]
        %v643 = vld [vmem:[%s3 + $0xb4] sm:$0xf]
        %v644 = vld [vmem:[%s3 + $0xb8] sm:$0xf]
        %v645 = vld [vmem:[%s3 + $0xbc] sm:$0xf]
        %v646 = vld [vmem:[%s3 + $0xc0] sm:$0xf]
        %v647 = vld [vmem:[%s3 + $0xc4] sm:$0xf]
        %v648 = vld [vmem:[%s3 + $0xc8] sm:$0xf]
        %v649 = vld [vmem:[%s3 + $0xcc] sm:$0xf]
        %v650 = vld [vmem:[%s3 + $0xd0] sm:$0xf]
        %v651 = vld [vmem:[%s3 + $0xd4] sm:$0xf]
        %v652 = vld [vmem:[%s3 + $0xd8] sm:$0xf]
        %v653 = vld [vmem:[%s3 + $0xdc] sm:$0xf]
        %v654 = vld [vmem:[%s3 + $0xe0] sm:$0xf]
        %v655 = vld [vmem:[%s3 + $0xe4] sm:$0xf]
        %v656 = vld [vmem:[%s3 + $0xe8] sm:$0xf]
        %v657 = vld [vmem:[%s3 + $0xec] sm:$0xf]
        %v658 = vld [vmem:[%s3 + $0xf0] sm:$0xf]
        %v659 = vld [vmem:[%s3 + $0xf4] sm:$0xf]
        %v660 = vld [vmem:[%s3 + $0xf8] sm:$0xf]
        %v661 = vld [vmem:[%s3 + $0xfc] sm:$0xf]
        %v662 = vld [vmem:[%s3 + $0x100] sm:$0xf]
        %v663 = vld [vmem:[%s3 + $0x104] sm:$0xf]
        %v664 = vld [vmem:[%s3 + $0x108] sm:$0xf]
        %v665 = vld [vmem:[%s3 + $0x10c] sm:$0xf]
        %v666 = vld [vmem:[%s3 + $0x110] sm:$0xf]
        %v667 = vld [vmem:[%s3 + $0x114] sm:$0xf]
        %v668 = vld [vmem:[%s3 + $0x118] sm:$0xf]
        %v669 = vld [vmem:[%s3 + $0x11c] sm:$0xf]
        %v670 = vld [vmem:[%s3 + $0x120] sm:$0xf]
        %v671 = vld [vmem:[%s3 + $0x124] sm:$0xf]
        %v672 = vld [vmem:[%s3 + $0x128] sm:$0xf]
        %v673 = vld [vmem:[%s3 + $0x12c] sm:$0xf]
        %v674 = vld [vmem:[%s3 + $0x130] sm:$0xf]
        %v675 = vld [vmem:[%s3 + $0x134] sm:$0xf]
        %v676 = vld [vmem:[%s3 + $0x138] sm:$0xf]
        %v677 = vld [vmem:[%s3 + $0x13c] sm:$0xf]
        %v678 = vld [vmem:[%s3 + $0x140] sm:$0xf]
        %v679 = vld [vmem:[%s3 + $0x144] sm:$0xf]
        %v680 = vld [vmem:[%s3 + $0x148] sm:$0xf]
        %v681 = vld [vmem:[%s3 + $0x14c] sm:$0xf]
        %v682 = vld [vmem:[%s3 + $0x150] sm:$0xf]
        %v683 = vld [vmem:[%s3 + $0x154] sm:$0xf]
        %v684 = vld [vmem:[%s3 + $0x158] sm:$0xf]
        %v685 = vld [vmem:[%s3 + $0x15c] sm:$0xf]
        %v686 = vld [vmem:[%s3 + $0x160] sm:$0xf]
        %v687 = vld [vmem:[%s3 + $0x164] sm:$0xf]
        %v688 = vld [vmem:[%s3 + $0x168] sm:$0xf]
        %v689 = vld [vmem:[%s3 + $0x16c] sm:$0xf]
        %v690 = vld [vmem:[%s3 + $0x170] sm:$0xf]
        %v691 = vld [vmem:[%s3 + $0x174] sm:$0xf]
        %v692 = vld [vmem:[%s3 + $0x178] sm:$0xf]
        %v693 = vld [vmem:[%s3 + $0x17c] sm:$0xf]
        %v694 = vld [vmem:[%s3 + $0x180] sm:$0xf]
        %v695 = vld [vmem:[%s3 + $0x184] sm:$0xf]
        %v696 = vld [vmem:[%s3 + $0x188] sm:$0xf]
        %v697 = vld [vmem:[%s3 + $0x18c] sm:$0xf]
        %v698 = vld [vmem:[%s3 + $0x190] sm:$0xf]
        %v699 = vld [vmem:[%s3 + $0x194] sm:$0xf]
        %v700 = vld [vmem:[%s3 + $0x198] sm:$0xf]
        %v701 = vld [vmem:[%s3 + $0x19c] sm:$0xf]
        %v702 = vld [vmem:[%s3 + $0x1a0] sm:$0xf]
        %v703 = vld [vmem:[%s3 + $0x1a4] sm:$0xf]
        %v704 = vld [vmem:[%s3 + $0x1a8] sm:$0xf]
        %v705 = vld [vmem:[%s3 + $0x1ac] sm:$0xf]
        %v706 = vld [vmem:[%s3 + $0x1b0] sm:$0xf]
        %v707 = vld [vmem:[%s3 + $0x1b4] sm:$0xf]
        %v708 = vld [vmem:[%s3 + $0x1b8] sm:$0xf]
        %v709 = vld [vmem:[%s3 + $0x1bc] sm:$0xf]
        %v710 = vld [vmem:[%s3 + $0x1c0] sm:$0xf]
        %v711 = vld [vmem:[%s3 + $0x1c4] sm:$0xf]
        %v712 = vld [vmem:[%s3 + $0x1c8] sm:$0xf]
        %v713 = vld [vmem:[%s3 + $0x1cc] sm:$0xf]
        %v714 = vld [vmem:[%s3 + $0x1d0] sm:$0xf]
        %v715 = vld [vmem:[%s3 + $0x1d4] sm:$0xf]
        %v716 = vld [vmem:[%s3 + $0x1d8] sm:$0xf]
        %v717 = vld [vmem:[%s3 + $0x1dc] sm:$0xf]
        %v718 = vld [vmem:[%s3 + $0x1e0] sm:$0xf]
        %v719 = vld [vmem:[%s3 + $0x1e4] sm:$0xf]
        %v720 = vld [vmem:[%s3 + $0x1e8] sm:$0xf]
        %v721 = vld [vmem:[%s3 + $0x1ec] sm:$0xf]
        %v722 = vld [vmem:[%s3 + $0x1f0] sm:$0xf]
        %v723 = vld [vmem:[%s3 + $0x1f4] sm:$0xf]
        %v724 = vld [vmem:[%s3 + $0x1f8] sm:$0xf]
        %v725 = vld [vmem:[%s3 + $0x1fc] sm:$0xf]
        %v726 = vld [vmem:[%s3 + $0x200] sm:$0xf]
        %v727 = vld [vmem:[%s3 + $0x204] sm:$0xf]
        %v728 = vld [vmem:[%s3 + $0x208] sm:$0xf]
        %v729 = vld [vmem:[%s3 + $0x20c] sm:$0xf]
        %v730 = vld [vmem:[%s3 + $0x210] sm:$0xf]
        %v731 = vld [vmem:[%s3 + $0x214] sm:$0xf]
        %v732 = vld [vmem:[%s3 + $0x218] sm:$0xf]
        %v733 = vld [vmem:[%s3 + $0x21c] sm:$0xf]
        %v734 = vld [vmem:[%s3 + $0x220] sm:$0xf]
        %v735 = vld [vmem:[%s3 + $0x224] sm:$0xf]
        %v736 = vld [vmem:[%s3 + $0x228] sm:$0xf]
        %v737 = vld [vmem:[%s3 + $0x22c] sm:$0xf]
        %v738 = vld [vmem:[%s3 + $0x230] sm:$0xf]
        %v739 = vld [vmem:[%s3 + $0x234] sm:$0xf]
        %v740 = vld [vmem:[%s3 + $0x238] sm:$0xf]
        %v741 = vld [vmem:[%s3 + $0x23c] sm:$0xf]
        %v742 = vld [vmem:[%s3 + $0x240] sm:$0xf]
        %v743 = vld [vmem:[%s3 + $0x244] sm:$0xf]
        %v744 = vld [vmem:[%s3 + $0x248] sm:$0xf]
        %v745 = vld [vmem:[%s3 + $0x24c] sm:$0xf]
        %v746 = vld [vmem:[%s3 + $0x250] sm:$0xf]
        %v747 = vld [vmem:[%s3 + $0x254] sm:$0xf]
        %v748 = vld [vmem:[%s3 + $0x258] sm:$0xf]
        %v749 = vld [vmem:[%s3 + $0x25c] sm:$0xf]
        %v750 = vld [vmem:[%s3 + $0x260] sm:$0xf]
        %v751 = vld [vmem:[%s3 + $0x264] sm:$0xf]
        %v752 = vld [vmem:[%s3 + $0x268] sm:$0xf]
        %v753 = vld [vmem:[%s3 + $0x26c] sm:$0xf]
        %v754 = vld [vmem:[%s3 + $0x270] sm:$0xf]
        %v755 = vld [vmem:[%s3 + $0x274] sm:$0xf]
        %v756 = vld [vmem:[%s3 + $0x278] sm:$0xf]
        %v757 = vld [vmem:[%s3 + $0x27c] sm:$0xf]
        %v758 = vld [vmem:[%s3 + $0x280] sm:$0xf]
        %v759 = vld [vmem:[%s3 + $0x284] sm:$0xf]
        %v760 = vld [vmem:[%s3 + $0x288] sm:$0xf]
        %v761 = vld [vmem:[%s3 + $0x28c] sm:$0xf]
        %v762 = vld [vmem:[%s3 + $0x290] sm:$0xf]
        %v763 = vld [vmem:[%s3 + $0x294] sm:$0xf]
        %v764 = vld [vmem:[%s3 + $0x298] sm:$0xf]
        %v765 = vld [vmem:[%s3 + $0x29c] sm:$0xf]
        %v766 = vld [vmem:[%s3 + $0x2a0] sm:$0xf]
        %v767 = vld [vmem:[%s3 + $0x2a4] sm:$0xf]
        %v768 = vld [vmem:[%s3 + $0x2a8] sm:$0xf]
        %v769 = vld [vmem:[%s3 + $0x2ac] sm:$0xf]
        %v770 = vld [vmem:[%s3 + $0x2b0] sm:$0xf]
        %v771 = vld [vmem:[%s3 + $0x2b4] sm:$0xf]
        %v772 = vld [vmem:[%s3 + $0x2b8] sm:$0xf]
        %v773 = vld [vmem:[%s3 + $0x2bc] sm:$0xf]
        %v774 = vld [vmem:[%s3 + $0x2c0] sm:$0xf]
        %v775 = vld [vmem:[%s3 + $0x2c4] sm:$0xf]
        %v776 = vld [vmem:[%s3 + $0x2c8] sm:$0xf]
        %v777 = vld [vmem:[%s3 + $0x2cc] sm:$0xf]
        %v778 = vld [vmem:[%s3 + $0x2d0] sm:$0xf]
        %v779 = vld [vmem:[%s3 + $0x2d4] sm:$0xf]
        %v780 = vld [vmem:[%s3 + $0x2d8] sm:$0xf]
        %v781 = vld [vmem:[%s3 + $0x2dc] sm:$0xf]
        %v782 = vld [vmem:[%s3 + $0x2e0] sm:$0xf]
        %v783 = vld [vmem:[%s3 + $0x2e4] sm:$0xf]
        %v784 = vld [vmem:[%s3 + $0x2e8] sm:$0xf]
        %v785 = vld [vmem:[%s3 + $0x2ec] sm:$0xf]
        %v786 = vld [vmem:[%s3 + $0x2f0] sm:$0xf]
        %v787 = vld [vmem:[%s3 + $0x2f4] sm:$0xf]
        %v788 = vld [vmem:[%s3 + $0x2f8] sm:$0xf]
        %v789 = vld [vmem:[%s3 + $0x2fc] sm:$0xf]
        %v790 = vld [vmem:[%s3 + $0x300] sm:$0xf]
        %v791 = vld [vmem:[%s3 + $0x304] sm:$0xf]
        %v792 = vld [vmem:[%s3 + $0x308] sm:$0xf]
        %v793 = vld [vmem:[%s3 + $0x30c] sm:$0xf]
        %v794 = vld [vmem:[%s3 + $0x310] sm:$0xf]
        %v795 = vld [vmem:[%s3 + $0x314] sm:$0xf]
        %v796 = vld [vmem:[%s3 + $0x318] sm:$0xf]
        %v797 = vld [vmem:[%s3 + $0x31c] sm:$0xf]
        %v798 = vld [vmem:[%s3 + $0x320] sm:$0xf]
        %v799 = vld [vmem:[%s3 + $0x324] sm:$0xf]
        %v800 = vld [vmem:[%s3 + $0x328] sm:$0xf]
        %v801 = vld [vmem:[%s3 + $0x32c] sm:$0xf]
        %v802 = vld [vmem:[%s3 + $0x330] sm:$0xf]
        %v803 = vld [vmem:[%s3 + $0x334] sm:$0xf]
        %v804 = vld [vmem:[%s3 + $0x338] sm:$0xf]
        %v805 = vld [vmem:[%s3 + $0x33c] sm:$0xf]
        %v806 = vld [vmem:[%s3 + $0x340] sm:$0xf]
        %v807 = vld [vmem:[%s3 + $0x344] sm:$0xf]
        %v808 = vld [vmem:[%s3 + $0x348] sm:$0xf]
        %v809 = vld [vmem:[%s3 + $0x34c] sm:$0xf]
        %v810 = vld [vmem:[%s3 + $0x350] sm:$0xf]
        %v811 = vld [vmem:[%s3 + $0x354] sm:$0xf]
        %v812 = vld [vmem:[%s3 + $0x358] sm:$0xf]
        %v813 = vld [vmem:[%s3 + $0x35c] sm:$0xf]
        %v814 = vld [vmem:[%s3 + $0x360] sm:$0xf]
        %v815 = vld [vmem:[%s3 + $0x364] sm:$0xf]
        %v816 = vld [vmem:[%s3 + $0x368] sm:$0xf]
        %v817 = vld [vmem:[%s3 + $0x36c] sm:$0xf]
        %v818 = vld [vmem:[%s3 + $0x370] sm:$0xf]
        %v819 = vld [vmem:[%s3 + $0x374] sm:$0xf]
        %v820 = vld [vmem:[%s3 + $0x378] sm:$0xf]
        %v821 = vld [vmem:[%s3 + $0x37c] sm:$0xf]
        %v822 = vld [vmem:[%s3 + $0x380] sm:$0xf]
        %v823 = vld [vmem:[%s3 + $0x384] sm:$0xf]
        %v824 = vld [vmem:[%s3 + $0x388] sm:$0xf]
        %v825 = vld [vmem:[%s3 + $0x38c] sm:$0xf]
        %v826 = vld [vmem:[%s3 + $0x390] sm:$0xf]
        %v827 = vld [vmem:[%s3 + $0x394] sm:$0xf]
        %v828 = vld [vmem:[%s3 + $0x398] sm:$0xf]
        %v829 = vld [vmem:[%s3 + $0x39c] sm:$0xf]
        %v830 = vld [vmem:[%s3 + $0x3a0] sm:$0xf]
        %v831 = vld [vmem:[%s3 + $0x3a4] sm:$0xf]
        %v832 = vld [vmem:[%s3 + $0x3a8] sm:$0xf]
        %v833 = vld [vmem:[%s3 + $0x3ac] sm:$0xf]
        %v834 = vld [vmem:[%s3 + $0x3b0] sm:$0xf]
        %v835 = vld [vmem:[%s3 + $0x3b4] sm:$0xf]
        %v836 = vld [vmem:[%s3 + $0x3b8] sm:$0xf]
        %v837 = vld [vmem:[%s3 + $0x3bc] sm:$0xf]
        %v838 = vld [vmem:[%s3 + $0x3c0] sm:$0xf]
        %v839 = vld [vmem:[%s3 + $0x3c4] sm:$0xf]
        %v840 = vld [vmem:[%s3 + $0x3c8] sm:$0xf]
        %v841 = vld [vmem:[%s3 + $0x3cc] sm:$0xf]
        %v842 = vld [vmem:[%s3 + $0x3d0] sm:$0xf]
        %v843 = vld [vmem:[%s3 + $0x3d4] sm:$0xf]
        %v844 = vld [vmem:[%s3 + $0x3d8] sm:$0xf]
        %v845 = vld [vmem:[%s3 + $0x3dc] sm:$0xf]
        %v846 = vld [vmem:[%s3 + $0x3e0] sm:$0xf]
        %v847 = vld [vmem:[%s3 + $0x3e4] sm:$0xf]
        %v848 = vld [vmem:[%s3 + $0x3e8] sm:$0xf]
        %v849 = vld [vmem:[%s3 + $0x3ec] sm:$0xf]
        %v850 = vld [vmem:[%s3 + $0x3f0] sm:$0xf]
        %v851 = vld [vmem:[%s3 + $0x3f4] sm:$0xf]
        %v852 = vld [vmem:[%s3 + $0x3f8] sm:$0xf]
        %v853 = vld [vmem:[%s3 + $0x3fc] sm:$0xf]
        %v854 = vld [vmem:[%s4] sm:$0x1]
        %v856 = vlaneseq
        %v857 = vshrl.u32 %v856, 7
        %v858 = vsub.s32 0, %v857
        %v859 = vrot.slane %v854, %v858
        %v1117 = vunpack.c.l.b16 %v598
        %v1118 = vunpack.c.l.b16 %v599
        %v1119 = vunpack.c.l.b16 %v600
        %v1120 = vunpack.c.l.b16 %v601
        %v1121 = vunpack.c.l.b16 %v602
        %v1122 = vunpack.c.l.b16 %v603
        %v1123 = vunpack.c.l.b16 %v604
        %v1124 = vunpack.c.l.b16 %v605
        %v1125 = vunpack.c.l.b16 %v606
        %v1126 = vunpack.c.l.b16 %v607
        %v1127 = vunpack.c.l.b16 %v608
        %v1128 = vunpack.c.l.b16 %v609
        %v1129 = vunpack.c.l.b16 %v610
        %v1130 = vunpack.c.l.b16 %v611
        %v1131 = vunpack.c.l.b16 %v612
        %v1132 = vunpack.c.l.b16 %v613
        %v1133 = vunpack.c.l.b16 %v614
        %v1134 = vunpack.c.l.b16 %v615
        %v1135 = vunpack.c.l.b16 %v616
        %v1136 = vunpack.c.l.b16 %v617
        %v1137 = vunpack.c.l.b16 %v618
        %v1138 = vunpack.c.l.b16 %v619
        %v1139 = vunpack.c.l.b16 %v620
        %v1140 = vunpack.c.l.b16 %v621
        %v1141 = vunpack.c.l.b16 %v622
        %v1142 = vunpack.c.l.b16 %v623
        %v1143 = vunpack.c.l.b16 %v624
        %v1144 = vunpack.c.l.b16 %v625
        %v1145 = vunpack.c.l.b16 %v626
        %v1146 = vunpack.c.l.b16 %v627
        %v1147 = vunpack.c.l.b16 %v628
        %v1148 = vunpack.c.l.b16 %v629
        %v1149 = vunpack.c.l.b16 %v630
        %v1150 = vunpack.c.l.b16 %v631
        %v1151 = vunpack.c.l.b16 %v632
        %v1152 = vunpack.c.l.b16 %v633
        %v1153 = vunpack.c.l.b16 %v634
        %v1154 = vunpack.c.l.b16 %v635
        %v1155 = vunpack.c.l.b16 %v636
        %v1156 = vunpack.c.l.b16 %v637
        %v1157 = vunpack.c.l.b16 %v638
        %v1158 = vunpack.c.l.b16 %v639
        %v1159 = vunpack.c.l.b16 %v640
        %v1160 = vunpack.c.l.b16 %v641
        %v1161 = vunpack.c.l.b16 %v642
        %v1162 = vunpack.c.l.b16 %v643
        %v1163 = vunpack.c.l.b16 %v644
        %v1164 = vunpack.c.l.b16 %v645
        %v1165 = vunpack.c.l.b16 %v646
        %v1166 = vunpack.c.l.b16 %v647
        %v1167 = vunpack.c.l.b16 %v648
        %v1168 = vunpack.c.l.b16 %v649
        %v1169 = vunpack.c.l.b16 %v650
        %v1170 = vunpack.c.l.b16 %v651
        %v1171 = vunpack.c.l.b16 %v652
        %v1172 = vunpack.c.l.b16 %v653
        %v1173 = vunpack.c.l.b16 %v654
        %v1174 = vunpack.c.l.b16 %v655
        %v1175 = vunpack.c.l.b16 %v656
        %v1176 = vunpack.c.l.b16 %v657
        %v1177 = vunpack.c.l.b16 %v658
        %v1178 = vunpack.c.l.b16 %v659
        %v1179 = vunpack.c.l.b16 %v660
        %v1180 = vunpack.c.l.b16 %v661
        %v1181 = vunpack.c.l.b16 %v662
        %v1182 = vunpack.c.l.b16 %v663
        %v1183 = vunpack.c.l.b16 %v664
        %v1184 = vunpack.c.l.b16 %v665
        %v1185 = vunpack.c.l.b16 %v666
        %v1186 = vunpack.c.l.b16 %v667
        %v1187 = vunpack.c.l.b16 %v668
        %v1188 = vunpack.c.l.b16 %v669
        %v1189 = vunpack.c.l.b16 %v670
        %v1190 = vunpack.c.l.b16 %v671
        %v1191 = vunpack.c.l.b16 %v672
        %v1192 = vunpack.c.l.b16 %v673
        %v1193 = vunpack.c.l.b16 %v674
        %v1194 = vunpack.c.l.b16 %v675
        %v1195 = vunpack.c.l.b16 %v676
        %v1196 = vunpack.c.l.b16 %v677
        %v1197 = vunpack.c.l.b16 %v678
        %v1198 = vunpack.c.l.b16 %v679
        %v1199 = vunpack.c.l.b16 %v680
        %v1200 = vunpack.c.l.b16 %v681
        %v1201 = vunpack.c.l.b16 %v682
        %v1202 = vunpack.c.l.b16 %v683
        %v1203 = vunpack.c.l.b16 %v684
        %v1204 = vunpack.c.l.b16 %v685
        %v1205 = vunpack.c.l.b16 %v686
        %v1206 = vunpack.c.l.b16 %v687
        %v1207 = vunpack.c.l.b16 %v688
        %v1208 = vunpack.c.l.b16 %v689
        %v1209 = vunpack.c.l.b16 %v690
        %v1210 = vunpack.c.l.b16 %v691
        %v1211 = vunpack.c.l.b16 %v692
        %v1212 = vunpack.c.l.b16 %v693
        %v1213 = vunpack.c.l.b16 %v694
        %v1214 = vunpack.c.l.b16 %v695
        %v1215 = vunpack.c.l.b16 %v696
        %v1216 = vunpack.c.l.b16 %v697
        %v1217 = vunpack.c.l.b16 %v698
        %v1218 = vunpack.c.l.b16 %v699
        %v1219 = vunpack.c.l.b16 %v700
        %v1220 = vunpack.c.l.b16 %v701
        %v1221 = vunpack.c.l.b16 %v702
        %v1222 = vunpack.c.l.b16 %v703
        %v1223 = vunpack.c.l.b16 %v704
        %v1224 = vunpack.c.l.b16 %v705
        %v1225 = vunpack.c.l.b16 %v706
        %v1226 = vunpack.c.l.b16 %v707
        %v1227 = vunpack.c.l.b16 %v708
        %v1228 = vunpack.c.l.b16 %v709
        %v1229 = vunpack.c.l.b16 %v710
        %v1230 = vunpack.c.l.b16 %v711
        %v1231 = vunpack.c.l.b16 %v712
        %v1232 = vunpack.c.l.b16 %v713
        %v1233 = vunpack.c.l.b16 %v714
        %v1234 = vunpack.c.l.b16 %v715
        %v1235 = vunpack.c.l.b16 %v716
        %v1236 = vunpack.c.l.b16 %v717
        %v1237 = vunpack.c.l.b16 %v718
        %v1238 = vunpack.c.l.b16 %v719
        %v1239 = vunpack.c.l.b16 %v720
        %v1240 = vunpack.c.l.b16 %v721
        %v1241 = vunpack.c.l.b16 %v722
        %v1242 = vunpack.c.l.b16 %v723
        %v1243 = vunpack.c.l.b16 %v724
        %v1244 = vunpack.c.l.b16 %v725
        %v1245 = vunpack.c.l.b16 %v726
        %v1246 = vunpack.c.l.b16 %v727
        %v1247 = vunpack.c.l.b16 %v728
        %v1248 = vunpack.c.l.b16 %v729
        %v1249 = vunpack.c.l.b16 %v730
        %v1250 = vunpack.c.l.b16 %v731
        %v1251 = vunpack.c.l.b16 %v732
        %v1252 = vunpack.c.l.b16 %v733
        %v1253 = vunpack.c.l.b16 %v734
        %v1254 = vunpack.c.l.b16 %v735
        %v1255 = vunpack.c.l.b16 %v736
        %v1256 = vunpack.c.l.b16 %v737
        %v1257 = vunpack.c.l.b16 %v738
        %v1258 = vunpack.c.l.b16 %v739
        %v1259 = vunpack.c.l.b16 %v740
        %v1260 = vunpack.c.l.b16 %v741
        %v1261 = vunpack.c.l.b16 %v742
        %v1262 = vunpack.c.l.b16 %v743
        %v1263 = vunpack.c.l.b16 %v744
        %v1264 = vunpack.c.l.b16 %v745
        %v1265 = vunpack.c.l.b16 %v746
        %v1266 = vunpack.c.l.b16 %v747
        %v1267 = vunpack.c.l.b16 %v748
        %v1268 = vunpack.c.l.b16 %v749
        %v1269 = vunpack.c.l.b16 %v750
        %v1270 = vunpack.c.l.b16 %v751
        %v1271 = vunpack.c.l.b16 %v752
        %v1272 = vunpack.c.l.b16 %v753
        %v1273 = vunpack.c.l.b16 %v754
        %v1274 = vunpack.c.l.b16 %v755
        %v1275 = vunpack.c.l.b16 %v756
        %v1276 = vunpack.c.l.b16 %v757
        %v1277 = vunpack.c.l.b16 %v758
        %v1278 = vunpack.c.l.b16 %v759
        %v1279 = vunpack.c.l.b16 %v760
        %v1280 = vunpack.c.l.b16 %v761
        %v1281 = vunpack.c.l.b16 %v762
        %v1282 = vunpack.c.l.b16 %v763
        %v1283 = vunpack.c.l.b16 %v764
        %v1284 = vunpack.c.l.b16 %v765
        %v1285 = vunpack.c.l.b16 %v766
        %v1286 = vunpack.c.l.b16 %v767
        %v1287 = vunpack.c.l.b16 %v768
        %v1288 = vunpack.c.l.b16 %v769
        %v1289 = vunpack.c.l.b16 %v770
        %v1290 = vunpack.c.l.b16 %v771
        %v1291 = vunpack.c.l.b16 %v772
        %v1292 = vunpack.c.l.b16 %v773
        %v1293 = vunpack.c.l.b16 %v774
        %v1294 = vunpack.c.l.b16 %v775
        %v1295 = vunpack.c.l.b16 %v776
        %v1296 = vunpack.c.l.b16 %v777
        %v1297 = vunpack.c.l.b16 %v778
        %v1298 = vunpack.c.l.b16 %v779
        %v1299 = vunpack.c.l.b16 %v780
        %v1300 = vunpack.c.l.b16 %v781
        %v1301 = vunpack.c.l.b16 %v782
        %v1302 = vunpack.c.l.b16 %v783
        %v1303 = vunpack.c.l.b16 %v784
        %v1304 = vunpack.c.l.b16 %v785
        %v1305 = vunpack.c.l.b16 %v786
        %v1306 = vunpack.c.l.b16 %v787
        %v1307 = vunpack.c.l.b16 %v788
        %v1308 = vunpack.c.l.b16 %v789
        %v1309 = vunpack.c.l.b16 %v790
        %v1310 = vunpack.c.l.b16 %v791
        %v1311 = vunpack.c.l.b16 %v792
        %v1312 = vunpack.c.l.b16 %v793
        %v1313 = vunpack.c.l.b16 %v794
        %v1314 = vunpack.c.l.b16 %v795
        %v1315 = vunpack.c.l.b16 %v796
        %v1316 = vunpack.c.l.b16 %v797
        %v1317 = vunpack.c.l.b16 %v798
        %v1318 = vunpack.c.l.b16 %v799
        %v1319 = vunpack.c.l.b16 %v800
        %v1320 = vunpack.c.l.b16 %v801
        %v1321 = vunpack.c.l.b16 %v802
        %v1322 = vunpack.c.l.b16 %v803
        %v1323 = vunpack.c.l.b16 %v804
        %v1324 = vunpack.c.l.b16 %v805
        %v1325 = vunpack.c.l.b16 %v806
        %v1326 = vunpack.c.l.b16 %v807
        %v1327 = vunpack.c.l.b16 %v808
        %v1328 = vunpack.c.l.b16 %v809
        %v1329 = vunpack.c.l.b16 %v810
        %v1330 = vunpack.c.l.b16 %v811
        %v1331 = vunpack.c.l.b16 %v812
        %v1332 = vunpack.c.l.b16 %v813
        %v1333 = vunpack.c.l.b16 %v814
        %v1334 = vunpack.c.l.b16 %v815
        %v1335 = vunpack.c.l.b16 %v816
        %v1336 = vunpack.c.l.b16 %v817
        %v1337 = vunpack.c.l.b16 %v818
        %v1338 = vunpack.c.l.b16 %v819
        %v1339 = vunpack.c.l.b16 %v820
        %v1340 = vunpack.c.l.b16 %v821
        %v1341 = vunpack.c.l.b16 %v822
        %v1342 = vunpack.c.l.b16 %v823
        %v1343 = vunpack.c.l.b16 %v824
        %v1344 = vunpack.c.l.b16 %v825
        %v1345 = vunpack.c.l.b16 %v826
        %v1346 = vunpack.c.l.b16 %v827
        %v1347 = vunpack.c.l.b16 %v828
        %v1348 = vunpack.c.l.b16 %v829
        %v1349 = vunpack.c.l.b16 %v830
        %v1350 = vunpack.c.l.b16 %v831
        %v1351 = vunpack.c.l.b16 %v832
        %v1352 = vunpack.c.l.b16 %v833
        %v1353 = vunpack.c.l.b16 %v834
        %v1354 = vunpack.c.l.b16 %v835
        %v1355 = vunpack.c.l.b16 %v836
        %v1356 = vunpack.c.l.b16 %v837
        %v1357 = vunpack.c.l.b16 %v838
        %v1358 = vunpack.c.l.b16 %v839
        %v1359 = vunpack.c.l.b16 %v840
        %v1360 = vunpack.c.l.b16 %v841
        %v1361 = vunpack.c.l.b16 %v842
        %v1362 = vunpack.c.l.b16 %v843
        %v1363 = vunpack.c.l.b16 %v844
        %v1364 = vunpack.c.l.b16 %v845
        %v1365 = vunpack.c.l.b16 %v846
        %v1366 = vunpack.c.l.b16 %v847
        %v1367 = vunpack.c.l.b16 %v848
        %v1368 = vunpack.c.l.b16 %v849
        %v1369 = vunpack.c.l.b16 %v850
        %v1370 = vunpack.c.l.b16 %v851
        %v1371 = vunpack.c.l.b16 %v852
        %v1372 = vunpack.c.l.b16 %v853
        %v1373 = vpack.c.b16 %v1118, %v1117
        %v1374 = vpack.c.b16 %v1120, %v1119
        %v1375 = vpack.c.b16 %v1122, %v1121
        %v1376 = vpack.c.b16 %v1124, %v1123
        %v1377 = vpack.c.b16 %v1126, %v1125
        %v1378 = vpack.c.b16 %v1128, %v1127
        %v1379 = vpack.c.b16 %v1130, %v1129
        %v1380 = vpack.c.b16 %v1132, %v1131
        %v1381 = vpack.c.b16 %v1134, %v1133
        %v1382 = vpack.c.b16 %v1136, %v1135
        %v1383 = vpack.c.b16 %v1138, %v1137
        %v1384 = vpack.c.b16 %v1140, %v1139
        %v1385 = vpack.c.b16 %v1142, %v1141
        %v1386 = vpack.c.b16 %v1144, %v1143
        %v1387 = vpack.c.b16 %v1146, %v1145
        %v1388 = vpack.c.b16 %v1148, %v1147
        %v1389 = vpack.c.b16 %v1150, %v1149
        %v1390 = vpack.c.b16 %v1152, %v1151
        %v1391 = vpack.c.b16 %v1154, %v1153
        %v1392 = vpack.c.b16 %v1156, %v1155
        %v1393 = vpack.c.b16 %v1158, %v1157
        %v1394 = vpack.c.b16 %v1160, %v1159
        %v1395 = vpack.c.b16 %v1162, %v1161
        %v1396 = vpack.c.b16 %v1164, %v1163
        %v1397 = vpack.c.b16 %v1166, %v1165
        %v1398 = vpack.c.b16 %v1168, %v1167
        %v1399 = vpack.c.b16 %v1170, %v1169
        %v1400 = vpack.c.b16 %v1172, %v1171
        %v1401 = vpack.c.b16 %v1174, %v1173
        %v1402 = vpack.c.b16 %v1176, %v1175
        %v1403 = vpack.c.b16 %v1178, %v1177
        %v1404 = vpack.c.b16 %v1180, %v1179
        %v1405 = vpack.c.b16 %v1182, %v1181
        %v1406 = vpack.c.b16 %v1184, %v1183
        %v1407 = vpack.c.b16 %v1186, %v1185
        %v1408 = vpack.c.b16 %v1188, %v1187
        %v1409 = vpack.c.b16 %v1190, %v1189
        %v1410 = vpack.c.b16 %v1192, %v1191
        %v1411 = vpack.c.b16 %v1194, %v1193
        %v1412 = vpack.c.b16 %v1196, %v1195
        %v1413 = vpack.c.b16 %v1198, %v1197
        %v1414 = vpack.c.b16 %v1200, %v1199
        %v1415 = vpack.c.b16 %v1202, %v1201
        %v1416 = vpack.c.b16 %v1204, %v1203
        %v1417 = vpack.c.b16 %v1206, %v1205
        %v1418 = vpack.c.b16 %v1208, %v1207
        %v1419 = vpack.c.b16 %v1210, %v1209
        %v1420 = vpack.c.b16 %v1212, %v1211
        %v1421 = vpack.c.b16 %v1214, %v1213
        %v1422 = vpack.c.b16 %v1216, %v1215
        %v1423 = vpack.c.b16 %v1218, %v1217
        %v1424 = vpack.c.b16 %v1220, %v1219
        %v1425 = vpack.c.b16 %v1222, %v1221
        %v1426 = vpack.c.b16 %v1224, %v1223
        %v1427 = vpack.c.b16 %v1226, %v1225
        %v1428 = vpack.c.b16 %v1228, %v1227
        %v1429 = vpack.c.b16 %v1230, %v1229
        %v1430 = vpack.c.b16 %v1232, %v1231
        %v1431 = vpack.c.b16 %v1234, %v1233
        %v1432 = vpack.c.b16 %v1236, %v1235
        %v1433 = vpack.c.b16 %v1238, %v1237
        %v1434 = vpack.c.b16 %v1240, %v1239
        %v1435 = vpack.c.b16 %v1242, %v1241
        %v1436 = vpack.c.b16 %v1244, %v1243
        %v1437 = vpack.c.b16 %v1246, %v1245
        %v1438 = vpack.c.b16 %v1248, %v1247
        %v1439 = vpack.c.b16 %v1250, %v1249
        %v1440 = vpack.c.b16 %v1252, %v1251
        %v1441 = vpack.c.b16 %v1254, %v1253
        %v1442 = vpack.c.b16 %v1256, %v1255
        %v1443 = vpack.c.b16 %v1258, %v1257
        %v1444 = vpack.c.b16 %v1260, %v1259
        %v1445 = vpack.c.b16 %v1262, %v1261
        %v1446 = vpack.c.b16 %v1264, %v1263
        %v1447 = vpack.c.b16 %v1266, %v1265
        %v1448 = vpack.c.b16 %v1268, %v1267
        %v1449 = vpack.c.b16 %v1270, %v1269
        %v1450 = vpack.c.b16 %v1272, %v1271
        %v1451 = vpack.c.b16 %v1274, %v1273
        %v1452 = vpack.c.b16 %v1276, %v1275
        %v1453 = vpack.c.b16 %v1278, %v1277
        %v1454 = vpack.c.b16 %v1280, %v1279
        %v1455 = vpack.c.b16 %v1282, %v1281
        %v1456 = vpack.c.b16 %v1284, %v1283
        %v1457 = vpack.c.b16 %v1286, %v1285
        %v1458 = vpack.c.b16 %v1288, %v1287
        %v1459 = vpack.c.b16 %v1290, %v1289
        %v1460 = vpack.c.b16 %v1292, %v1291
        %v1461 = vpack.c.b16 %v1294, %v1293
        %v1462 = vpack.c.b16 %v1296, %v1295
        %v1463 = vpack.c.b16 %v1298, %v1297
        %v1464 = vpack.c.b16 %v1300, %v1299
        %v1465 = vpack.c.b16 %v1302, %v1301
        %v1466 = vpack.c.b16 %v1304, %v1303
        %v1467 = vpack.c.b16 %v1306, %v1305
        %v1468 = vpack.c.b16 %v1308, %v1307
        %v1469 = vpack.c.b16 %v1310, %v1309
        %v1470 = vpack.c.b16 %v1312, %v1311
        %v1471 = vpack.c.b16 %v1314, %v1313
        %v1472 = vpack.c.b16 %v1316, %v1315
        %v1473 = vpack.c.b16 %v1318, %v1317
        %v1474 = vpack.c.b16 %v1320, %v1319
        %v1475 = vpack.c.b16 %v1322, %v1321
        %v1476 = vpack.c.b16 %v1324, %v1323
        %v1477 = vpack.c.b16 %v1326, %v1325
        %v1478 = vpack.c.b16 %v1328, %v1327
        %v1479 = vpack.c.b16 %v1330, %v1329
        %v1480 = vpack.c.b16 %v1332, %v1331
        %v1481 = vpack.c.b16 %v1334, %v1333
        %v1482 = vpack.c.b16 %v1336, %v1335
        %v1483 = vpack.c.b16 %v1338, %v1337
        %v1484 = vpack.c.b16 %v1340, %v1339
        %v1485 = vpack.c.b16 %v1342, %v1341
        %v1486 = vpack.c.b16 %v1344, %v1343
        %v1487 = vpack.c.b16 %v1346, %v1345
        %v1488 = vpack.c.b16 %v1348, %v1347
        %v1489 = vpack.c.b16 %v1350, %v1349
        %v1490 = vpack.c.b16 %v1352, %v1351
        %v1491 = vpack.c.b16 %v1354, %v1353
        %v1492 = vpack.c.b16 %v1356, %v1355
        %v1493 = vpack.c.b16 %v1358, %v1357
        %v1494 = vpack.c.b16 %v1360, %v1359
        %v1495 = vpack.c.b16 %v1362, %v1361
        %v1496 = vpack.c.b16 %v1364, %v1363
        %v1497 = vpack.c.b16 %v1366, %v1365
        %v1498 = vpack.c.b16 %v1368, %v1367
        %v1499 = vpack.c.b16 %v1370, %v1369
        %v1500 = vpack.c.b16 %v1372, %v1371
        %1629 = vmatprep.subr.bf16.mxu0 0
        %1630 = vmatpush1.bf16.msra.mxu0 %v1373
        %1631 = vmatprep.subr.bf16.mxu0 0
        %1632 = vmatpush1.bf16.msra.mxu0 %v1374
        %1633 = vmatprep.subr.bf16.mxu0 0
        %1634 = vmatpush1.bf16.msra.mxu0 %v1375
        %1635 = vmatprep.subr.bf16.mxu0 0
        %1636 = vmatpush1.bf16.msra.mxu0 %v1376
        %1637 = vmatprep.subr.bf16.mxu0 0
        %1638 = vmatpush1.bf16.msra.mxu0 %v1377
        %1639 = vmatprep.subr.bf16.mxu0 0
        %1640 = vmatpush1.bf16.msra.mxu0 %v1378
        %1641 = vmatprep.subr.bf16.mxu0 0
        %1642 = vmatpush1.bf16.msra.mxu0 %v1379
        %1643 = vmatprep.subr.bf16.mxu0 0
        %1644 = vmatpush1.bf16.msra.mxu0 %v1380
        %1645 = vmatprep.subr.bf16.mxu0 0
        %1646 = vmatpush1.bf16.msra.mxu0 %v1381
        %1647 = vmatprep.subr.bf16.mxu0 0
        %1648 = vmatpush1.bf16.msra.mxu0 %v1382
        %1649 = vmatprep.subr.bf16.mxu0 0
        %1650 = vmatpush1.bf16.msra.mxu0 %v1383
        %1651 = vmatprep.subr.bf16.mxu0 0
        %1652 = vmatpush1.bf16.msra.mxu0 %v1384
        %1653 = vmatprep.subr.bf16.mxu0 0
        %1654 = vmatpush1.bf16.msra.mxu0 %v1385
        %1655 = vmatprep.subr.bf16.mxu0 0
        %1656 = vmatpush1.bf16.msra.mxu0 %v1386
        %1657 = vmatprep.subr.bf16.mxu0 0
        %1658 = vmatpush1.bf16.msra.mxu0 %v1387
        %1659 = vmatprep.subr.bf16.mxu0 0
        %1660 = vmatpush1.bf16.msra.mxu0 %v1388
        %1661 = vmatprep.mubr.bf16.mxu0 %v450
        %1662 = vmatmul.mubr.bf16.gmra.mrb[0].mxu0 %v435
        %v1663 = vpop.f32.mrb[0].mxu0
        %v1664 = vadd.f32 %v859, %v1663
        %v1665 = vpop.f32.mrb[0].mxu0
        %v1666 = vpop.f32.mrb[0].mxu0
        %v1667 = vadd.f32 %v859, %v1666
        %v1668 = vpop.f32.mrb[0].mxu0
        %1669 = vmatprep.mubr.bf16.mxu0 %v453
        %1670 = vmatmul.mubr.bf16.gmra.mrb[0].mxu0 %v436
        %v1671 = vpop.f32.mrb[0].mxu0
        %v1672 = vadd.f32 %v859, %v1671
        %v1673 = vpop.f32.mrb[0].mxu0
        %v1674 = vpop.f32.mrb[0].mxu0
        %v1675 = vadd.f32 %v859, %v1674
        %v1676 = vpop.f32.mrb[0].mxu0
        %1677 = vdwg.mxu0
        %1678 = vmatprep.subr.bf16.mxu0 0
        %1679 = vmatpush1.bf16.msra.mxu0 %v1389
        %1680 = vmatprep.subr.bf16.mxu0 0
        %1681 = vmatpush1.bf16.msra.mxu0 %v1390
        %1682 = vmatprep.subr.bf16.mxu0 0
        %1683 = vmatpush1.bf16.msra.mxu0 %v1391
        %1684 = vmatprep.subr.bf16.mxu0 0
        %1685 = vmatpush1.bf16.msra.mxu0 %v1392
        %1686 = vmatprep.subr.bf16.mxu0 0
        %1687 = vmatpush1.bf16.msra.mxu0 %v1393
        %1688 = vmatprep.subr.bf16.mxu0 0
        %1689 = vmatpush1.bf16.msra.mxu0 %v1394
        %1690 = vmatprep.subr.bf16.mxu0 0
        %1691 = vmatpush1.bf16.msra.mxu0 %v1395
        %1692 = vmatprep.subr.bf16.mxu0 0
        %1693 = vmatpush1.bf16.msra.mxu0 %v1396
        %1694 = vmatprep.subr.bf16.mxu0 0
        %1695 = vmatpush1.bf16.msra.mxu0 %v1397
        %1696 = vmatprep.subr.bf16.mxu0 0
        %1697 = vmatpush1.bf16.msra.mxu0 %v1398
        %1698 = vmatprep.subr.bf16.mxu0 0
        %1699 = vmatpush1.bf16.msra.mxu0 %v1399
        %1700 = vmatprep.subr.bf16.mxu0 0
        %1701 = vmatpush1.bf16.msra.mxu0 %v1400
        %1702 = vmatprep.subr.bf16.mxu0 0
        %1703 = vmatpush1.bf16.msra.mxu0 %v1401
        %1704 = vmatprep.subr.bf16.mxu0 0
        %1705 = vmatpush1.bf16.msra.mxu0 %v1402
        %1706 = vmatprep.subr.bf16.mxu0 0
        %1707 = vmatpush1.bf16.msra.mxu0 %v1403
        %1708 = vmatprep.subr.bf16.mxu0 0
        %1709 = vmatpush1.bf16.msra.mxu0 %v1404
        %1710 = vmatprep.mubr.bf16.mxu0 %v471
        %1711 = vmatmul.mubr.bf16.gmra.mrb[0].mxu0 %v461
        %v1712 = vpop.f32.mrb[0].mxu0
        %v1713 = vadd.f32 %v1664, %v1712
        %v1714 = vpop.f32.mrb[0].mxu0
        %v1715 = vpop.f32.mrb[0].mxu0
        %v1716 = vadd.f32 %v1667, %v1715
        %v1717 = vpop.f32.mrb[0].mxu0
        %1718 = vmatprep.mubr.bf16.mxu0 %v470
        %1719 = vmatmul.mubr.bf16.gmra.mrb[0].mxu0 %v460
        %v1720 = vpop.f32.mrb[0].mxu0
        %v1721 = vadd.f32 %v1672, %v1720
        %v1722 = vpop.f32.mrb[0].mxu0
        %v1723 = vpop.f32.mrb[0].mxu0
        %v1724 = vadd.f32 %v1675, %v1723
        %v1725 = vpop.f32.mrb[0].mxu0
        %1726 = vdwg.mxu0
        %1727 = vmatprep.subr.bf16.mxu0 0
        %1728 = vmatpush1.bf16.msra.mxu0 %v1405
        %1729 = vmatprep.subr.bf16.mxu0 0
        %1730 = vmatpush1.bf16.msra.mxu0 %v1406
        %1731 = vmatprep.subr.bf16.mxu0 0
        %1732 = vmatpush1.bf16.msra.mxu0 %v1407
        %1733 = vmatprep.subr.bf16.mxu0 0
        %1734 = vmatpush1.bf16.msra.mxu0 %v1408
        %1735 = vmatprep.subr.bf16.mxu0 0
        %1736 = vmatpush1.bf16.msra.mxu0 %v1409
        %1737 = vmatprep.subr.bf16.mxu0 0
        %1738 = vmatpush1.bf16.msra.mxu0 %v1410
        %1739 = vmatprep.subr.bf16.mxu0 0
        %1740 = vmatpush1.bf16.msra.mxu0 %v1411
        %1741 = vmatprep.subr.bf16.mxu0 0
        %1742 = vmatpush1.bf16.msra.mxu0 %v1412
        %1743 = vmatprep.subr.bf16.mxu0 0
        %1744 = vmatpush1.bf16.msra.mxu0 %v1413
        %1745 = vmatprep.subr.bf16.mxu0 0
        %1746 = vmatpush1.bf16.msra.mxu0 %v1414
        %1747 = vmatprep.subr.bf16.mxu0 0
        %1748 = vmatpush1.bf16.msra.mxu0 %v1415
        %1749 = vmatprep.subr.bf16.mxu0 0
        %1750 = vmatpush1.bf16.msra.mxu0 %v1416
        %1751 = vmatprep.subr.bf16.mxu0 0
        %1752 = vmatpush1.bf16.msra.mxu0 %v1417
        %1753 = vmatprep.subr.bf16.mxu0 0
        %1754 = vmatpush1.bf16.msra.mxu0 %v1418
        %1755 = vmatprep.subr.bf16.mxu0 0
        %1756 = vmatpush1.bf16.msra.mxu0 %v1419
        %1757 = vmatprep.subr.bf16.mxu0 0
        %1758 = vmatpush1.bf16.msra.mxu0 %v1420
        %1759 = vmatprep.mubr.bf16.mxu0 %v487
        %1760 = vmatmul.mubr.bf16.gmra.mrb[0].mxu0 %v477
        %v1761 = vpop.f32.mrb[0].mxu0
        %v1762 = vadd.f32 %v1713, %v1761
        %v1763 = vpop.f32.mrb[0].mxu0
        %v1764 = vpop.f32.mrb[0].mxu0
        %v1765 = vadd.f32 %v1716, %v1764
        %v1766 = vpop.f32.mrb[0].mxu0
        %1767 = vmatprep.mubr.bf16.mxu0 %v486
        %1768 = vmatmul.mubr.bf16.gmra.mrb[0].mxu0 %v476
        %v1769 = vpop.f32.mrb[0].mxu0
        %v1770 = vadd.f32 %v1721, %v1769
        %v1771 = vpop.f32.mrb[0].mxu0
        %v1772 = vpop.f32.mrb[0].mxu0
        %v1773 = vadd.f32 %v1724, %v1772
        %v1774 = vpop.f32.mrb[0].mxu0
        %1775 = vdwg.mxu0
        %1776 = vmatprep.subr.bf16.mxu0 0
        %1777 = vmatpush1.bf16.msra.mxu0 %v1421
        %1778 = vmatprep.subr.bf16.mxu0 0
        %1779 = vmatpush1.bf16.msra.mxu0 %v1422
        %1780 = vmatprep.subr.bf16.mxu0 0
        %1781 = vmatpush1.bf16.msra.mxu0 %v1423
        %1782 = vmatprep.subr.bf16.mxu0 0
        %1783 = vmatpush1.bf16.msra.mxu0 %v1424
        %1784 = vmatprep.subr.bf16.mxu0 0
        %1785 = vmatpush1.bf16.msra.mxu0 %v1425
        %1786 = vmatprep.subr.bf16.mxu0 0
        %1787 = vmatpush1.bf16.msra.mxu0 %v1426
        %1788 = vmatprep.subr.bf16.mxu0 0
        %1789 = vmatpush1.bf16.msra.mxu0 %v1427
        %1790 = vmatprep.subr.bf16.mxu0 0
        %1791 = vmatpush1.bf16.msra.mxu0 %v1428
        %1792 = vmatprep.subr.bf16.mxu0 0
        %1793 = vmatpush1.bf16.msra.mxu0 %v1429
        %1794 = vmatprep.subr.bf16.mxu0 0
        %1795 = vmatpush1.bf16.msra.mxu0 %v1430
        %1796 = vmatprep.subr.bf16.mxu0 0
        %1797 = vmatpush1.bf16.msra.mxu0 %v1431
        %1798 = vmatprep.subr.bf16.mxu0 0
        %1799 = vmatpush1.bf16.msra.mxu0 %v1432
        %1800 = vmatprep.subr.bf16.mxu0 0
        %1801 = vmatpush1.bf16.msra.mxu0 %v1433
        %1802 = vmatprep.subr.bf16.mxu0 0
        %1803 = vmatpush1.bf16.msra.mxu0 %v1434
        %1804 = vmatprep.subr.bf16.mxu0 0
        %1805 = vmatpush1.bf16.msra.mxu0 %v1435
        %1806 = vmatprep.subr.bf16.mxu0 0
        %1807 = vmatpush1.bf16.msra.mxu0 %v1436
        %1808 = vmatprep.mubr.bf16.mxu0 %v503
        %1809 = vmatmul.mubr.bf16.gmra.mrb[0].mxu0 %v493
        %v1810 = vpop.f32.mrb[0].mxu0
        %v1811 = vadd.f32 %v1762, %v1810
        %v1812 = vpop.f32.mrb[0].mxu0
        %v1813 = vpop.f32.mrb[0].mxu0
        %v1814 = vadd.f32 %v1765, %v1813
        %v1815 = vpop.f32.mrb[0].mxu0
        %1816 = vmatprep.mubr.bf16.mxu0 %v508
        %1817 = vmatmul.mubr.bf16.gmra.mrb[0].mxu0 %v492
        %v1818 = vpop.f32.mrb[0].mxu0
        %v1819 = vadd.f32 %v1770, %v1818
        %v1820 = vpop.f32.mrb[0].mxu0
        %v1821 = vpop.f32.mrb[0].mxu0
        %v1822 = vadd.f32 %v1773, %v1821
        %v1823 = vpop.f32.mrb[0].mxu0
        %1824 = vdwg.mxu0
        %1825 = vmatprep.subr.bf16.mxu0 0
        %1826 = vmatpush1.bf16.msra.mxu0 %v1437
        %1827 = vmatprep.subr.bf16.mxu0 0
        %1828 = vmatpush1.bf16.msra.mxu0 %v1438
        %1829 = vmatprep.subr.bf16.mxu0 0
        %1830 = vmatpush1.bf16.msra.mxu0 %v1439
        %1831 = vmatprep.subr.bf16.mxu0 0
        %1832 = vmatpush1.bf16.msra.mxu0 %v1440
        %1833 = vmatprep.subr.bf16.mxu0 0
        %1834 = vmatpush1.bf16.msra.mxu0 %v1441
        %1835 = vmatprep.subr.bf16.mxu0 0
        %1836 = vmatpush1.bf16.msra.mxu0 %v1442
        %1837 = vmatprep.subr.bf16.mxu0 0
        %1838 = vmatpush1.bf16.msra.mxu0 %v1443
        %1839 = vmatprep.subr.bf16.mxu0 0
        %1840 = vmatpush1.bf16.msra.mxu0 %v1444
        %1841 = vmatprep.subr.bf16.mxu0 0
        %1842 = vmatpush1.bf16.msra.mxu0 %v1445
        %1843 = vmatprep.subr.bf16.mxu0 0
        %1844 = vmatpush1.bf16.msra.mxu0 %v1446
        %1845 = vmatprep.subr.bf16.mxu0 0
        %1846 = vmatpush1.bf16.msra.mxu0 %v1447
        %1847 = vmatprep.subr.bf16.mxu0 0
        %1848 = vmatpush1.bf16.msra.mxu0 %v1448
        %1849 = vmatprep.subr.bf16.mxu0 0
        %1850 = vmatpush1.bf16.msra.mxu0 %v1449
        %1851 = vmatprep.subr.bf16.mxu0 0
        %1852 = vmatpush1.bf16.msra.mxu0 %v1450
        %1853 = vmatprep.subr.bf16.mxu0 0
        %1854 = vmatpush1.bf16.msra.mxu0 %v1451
        %1855 = vmatprep.subr.bf16.mxu0 0
        %1856 = vmatpush1.bf16.msra.mxu0 %v1452
        %1857 = vmatprep.mubr.bf16.mxu0 %v527
        %1858 = vmatmul.mubr.bf16.gmra.mrb[0].mxu0 %v515
        %v1859 = vpop.f32.mrb[0].mxu0
        %v1860 = vadd.f32 %v1811, %v1859
        %v1861 = vpop.f32.mrb[0].mxu0
        %v1862 = vpop.f32.mrb[0].mxu0
        %v1863 = vadd.f32 %v1814, %v1862
        %v1864 = vpop.f32.mrb[0].mxu0
        %1865 = vmatprep.mubr.bf16.mxu0 %v533
        %1866 = vmatmul.mubr.bf16.gmra.mrb[0].mxu0 %v517
        %v1867 = vpop.f32.mrb[0].mxu0
        %v1868 = vadd.f32 %v1819, %v1867
        %v1869 = vpop.f32.mrb[0].mxu0
        %v1870 = vpop.f32.mrb[0].mxu0
        %v1871 = vadd.f32 %v1822, %v1870
        %v1872 = vpop.f32.mrb[0].mxu0
        %1873 = vdwg.mxu0
        %1874 = vmatprep.subr.bf16.mxu0 0
        %1875 = vmatpush1.bf16.msra.mxu0 %v1453
        %1876 = vmatprep.subr.bf16.mxu0 0
        %1877 = vmatpush1.bf16.msra.mxu0 %v1454
        %1878 = vmatprep.subr.bf16.mxu0 0
        %1879 = vmatpush1.bf16.msra.mxu0 %v1455
        %1880 = vmatprep.subr.bf16.mxu0 0
        %1881 = vmatpush1.bf16.msra.mxu0 %v1456
        %1882 = vmatprep.subr.bf16.mxu0 0
        %1883 = vmatpush1.bf16.msra.mxu0 %v1457
        %1884 = vmatprep.subr.bf16.mxu0 0
        %1885 = vmatpush1.bf16.msra.mxu0 %v1458
        %1886 = vmatprep.subr.bf16.mxu0 0
        %1887 = vmatpush1.bf16.msra.mxu0 %v1459
        %1888 = vmatprep.subr.bf16.mxu0 0
        %1889 = vmatpush1.bf16.msra.mxu0 %v1460
        %1890 = vmatprep.subr.bf16.mxu0 0
        %1891 = vmatpush1.bf16.msra.mxu0 %v1461
        %1892 = vmatprep.subr.bf16.mxu0 0
        %1893 = vmatpush1.bf16.msra.mxu0 %v1462
        %1894 = vmatprep.subr.bf16.mxu0 0
        %1895 = vmatpush1.bf16.msra.mxu0 %v1463
        %1896 = vmatprep.subr.bf16.mxu0 0
        %1897 = vmatpush1.bf16.msra.mxu0 %v1464
        %1898 = vmatprep.subr.bf16.mxu0 0
        %1899 = vmatpush1.bf16.msra.mxu0 %v1465
        %1900 = vmatprep.subr.bf16.mxu0 0
        %1901 = vmatpush1.bf16.msra.mxu0 %v1466
        %1902 = vmatprep.subr.bf16.mxu0 0
        %1903 = vmatpush1.bf16.msra.mxu0 %v1467
        %1904 = vmatprep.subr.bf16.mxu0 0
        %1905 = vmatpush1.bf16.msra.mxu0 %v1468
        %1906 = vmatprep.mubr.bf16.mxu0 %v551
        %1907 = vmatmul.mubr.bf16.gmra.mrb[0].mxu0 %v539
        %v1908 = vpop.f32.mrb[0].mxu0
        %v1909 = vadd.f32 %v1860, %v1908
        %v1910 = vpop.f32.mrb[0].mxu0
        %v1911 = vpop.f32.mrb[0].mxu0
        %v1912 = vadd.f32 %v1863, %v1911
        %v1913 = vpop.f32.mrb[0].mxu0
        %1914 = vmatprep.mubr.bf16.mxu0 %v555
        %1915 = vmatmul.mubr.bf16.gmra.mrb[0].mxu0 %v541
        %v1916 = vpop.f32.mrb[0].mxu0
        %v1917 = vadd.f32 %v1868, %v1916
        %v1918 = vpop.f32.mrb[0].mxu0
        %v1919 = vpop.f32.mrb[0].mxu0
        %v1920 = vadd.f32 %v1871, %v1919
        %v1921 = vpop.f32.mrb[0].mxu0
        %1922 = vdwg.mxu0
        %1923 = vmatprep.subr.bf16.mxu0 0
        %1924 = vmatpush1.bf16.msra.mxu0 %v1469
        %1925 = vmatprep.subr.bf16.mxu0 0
        %1926 = vmatpush1.bf16.msra.mxu0 %v1470
        %1927 = vmatprep.subr.bf16.mxu0 0
        %1928 = vmatpush1.bf16.msra.mxu0 %v1471
        %1929 = vmatprep.subr.bf16.mxu0 0
        %1930 = vmatpush1.bf16.msra.mxu0 %v1472
        %1931 = vmatprep.subr.bf16.mxu0 0
        %1932 = vmatpush1.bf16.msra.mxu0 %v1473
        %1933 = vmatprep.subr.bf16.mxu0 0
        %1934 = vmatpush1.bf16.msra.mxu0 %v1474
        %1935 = vmatprep.subr.bf16.mxu0 0
        %1936 = vmatpush1.bf16.msra.mxu0 %v1475
        %1937 = vmatprep.subr.bf16.mxu0 0
        %1938 = vmatpush1.bf16.msra.mxu0 %v1476
        %1939 = vmatprep.subr.bf16.mxu0 0
        %1940 = vmatpush1.bf16.msra.mxu0 %v1477
        %1941 = vmatprep.subr.bf16.mxu0 0
        %1942 = vmatpush1.bf16.msra.mxu0 %v1478
        %1943 = vmatprep.subr.bf16.mxu0 0
        %1944 = vmatpush1.bf16.msra.mxu0 %v1479
        %1945 = vmatprep.subr.bf16.mxu0 0
        %1946 = vmatpush1.bf16.msra.mxu0 %v1480
        %1947 = vmatprep.subr.bf16.mxu0 0
        %1948 = vmatpush1.bf16.msra.mxu0 %v1481
        %1949 = vmatprep.subr.bf16.mxu0 0
        %1950 = vmatpush1.bf16.msra.mxu0 %v1482
        %1951 = vmatprep.subr.bf16.mxu0 0
        %1952 = vmatpush1.bf16.msra.mxu0 %v1483
        %1953 = vmatprep.subr.bf16.mxu0 0
        %1954 = vmatpush1.bf16.msra.mxu0 %v1484
        %1955 = vmatprep.mubr.bf16.mxu0 %v573
        %1956 = vmatmul.mubr.bf16.gmra.mrb[0].mxu0 %v561
        %v1957 = vpop.f32.mrb[0].mxu0
        %v1958 = vadd.f32 %v1909, %v1957
        %v1959 = vpop.f32.mrb[0].mxu0
        %v1960 = vpop.f32.mrb[0].mxu0
        %v1961 = vadd.f32 %v1912, %v1960
        %v1962 = vpop.f32.mrb[0].mxu0
        %1963 = vmatprep.mubr.bf16.mxu0 %v577
        %1964 = vmatmul.mubr.bf16.gmra.mrb[0].mxu0 %v563
        %v1965 = vpop.f32.mrb[0].mxu0
        %v1966 = vadd.f32 %v1917, %v1965
        %v1967 = vpop.f32.mrb[0].mxu0
        %v1968 = vpop.f32.mrb[0].mxu0
        %v1969 = vadd.f32 %v1920, %v1968
        %v1970 = vpop.f32.mrb[0].mxu0
        %1971 = vdwg.mxu0
        %1972 = vmatprep.subr.bf16.mxu0 0
        %1973 = vmatpush1.bf16.msra.mxu0 %v1485
        %1974 = vmatprep.subr.bf16.mxu0 0
        %1975 = vmatpush1.bf16.msra.mxu0 %v1486
        %1976 = vmatprep.subr.bf16.mxu0 0
        %1977 = vmatpush1.bf16.msra.mxu0 %v1487
        %1978 = vmatprep.subr.bf16.mxu0 0
        %1979 = vmatpush1.bf16.msra.mxu0 %v1488
        %1980 = vmatprep.subr.bf16.mxu0 0
        %1981 = vmatpush1.bf16.msra.mxu0 %v1489
        %1982 = vmatprep.subr.bf16.mxu0 0
        %1983 = vmatpush1.bf16.msra.mxu0 %v1490
        %1984 = vmatprep.subr.bf16.mxu0 0
        %1985 = vmatpush1.bf16.msra.mxu0 %v1491
        %1986 = vmatprep.subr.bf16.mxu0 0
        %1987 = vmatpush1.bf16.msra.mxu0 %v1492
        %1988 = vmatprep.subr.bf16.mxu0 0
        %1989 = vmatpush1.bf16.msra.mxu0 %v1493
        %1990 = vmatprep.subr.bf16.mxu0 0
        %1991 = vmatpush1.bf16.msra.mxu0 %v1494
        %1992 = vmatprep.subr.bf16.mxu0 0
        %1993 = vmatpush1.bf16.msra.mxu0 %v1495
        %1994 = vmatprep.subr.bf16.mxu0 0
        %1995 = vmatpush1.bf16.msra.mxu0 %v1496
        %1996 = vmatprep.subr.bf16.mxu0 0
        %1997 = vmatpush1.bf16.msra.mxu0 %v1497
        %1998 = vmatprep.subr.bf16.mxu0 0
        %1999 = vmatpush1.bf16.msra.mxu0 %v1498
        %2000 = vmatprep.subr.bf16.mxu0 0
        %2001 = vmatpush1.bf16.msra.mxu0 %v1499
        %2002 = vmatprep.subr.bf16.mxu0 0
        %2003 = vmatpush1.bf16.msra.mxu0 %v1500
        %2004 = vmatprep.mubr.bf16.mxu0 %v592
        %2005 = vmatmul.mubr.bf16.gmra.mrb[0].mxu0 %v583
        %v2006 = vpop.f32.mrb[0].mxu0
        %v2007 = vadd.f32 %v1958, %v2006
        %v2008 = vpop.f32.mrb[0].mxu0
        %v2009 = vpop.f32.mrb[0].mxu0
        %v2010 = vadd.f32 %v1961, %v2009
        %v2011 = vpop.f32.mrb[0].mxu0
        %2012 = vmatprep.mubr.bf16.mxu0 %v595
        %2013 = vmatmul.mubr.bf16.gmra.mrb[0].mxu0 %v585
        %v2014 = vpop.f32.mrb[0].mxu0
        %v2015 = vadd.f32 %v1966, %v2014
        %v2016 = vpop.f32.mrb[0].mxu0
        %v2017 = vpop.f32.mrb[0].mxu0
        %v2018 = vadd.f32 %v1969, %v2017
        %v2019 = vpop.f32.mrb[0].mxu0
        %2020 = vdwg.mxu0
        %v2021 = vmax.f32 %v2007, 0.0
        %v2022 = vmax.f32 %v2010, 0.0
        %v2023 = vmax.f32 %v2015, 0.0
        %v2024 = vmax.f32 %v2018, 0.0
        %v2025 = vpack.c.bf16 %v2022, %v2021
        %v2026 = vpack.c.bf16 %v2024, %v2023
        %v2028 = vshrl.u32 %v2025, 16
        %v2030 = vshll.u32 %v2025, 16
        %v2032 = vrot.slane %v2030, 1
        %v2033 = vor.u32 %v2028, %v2032
        %v2035 = vshll.u32 %v2026, 16
        %v2037 = vrot.slane %v2035, 1
        %v2038 = vsel %vm438, %v2033, %v2037
        %v2039 = vshrl.u32 %v2026, 16
        %v2041 = vor.u32 %v2039, %v2037
        %v2046 = vrot.slane %v2025, 1
        %v2047 = vrot.slane %v2026, 1
        %v2048 = vsel %vm458, %v2046, %v2047
        %v2051 = vrot.slane %v2028, 1
        %v2052 = vrot.slane %v2030, 2
        %v2053 = vor.u32 %v2051, %v2052
        %v2054 = vrot.slane %v2039, 1
        %v2055 = vrot.slane %v2035, 2
        %v2056 = vor.u32 %v2054, %v2055
        %v2057 = vsel %vm464, %v2053, %v2056
        %v2060 = vrot.slane %v2025, 2
        %v2061 = vrot.slane %v2026, 2
        %v2062 = vsel %vm474, %v2060, %v2061
        %v2065 = vrot.slane %v2028, 2
        %v2066 = vrot.slane %v2030, 3
        %v2067 = vor.u32 %v2065, %v2066
        %v2068 = vrot.slane %v2039, 2
        %v2069 = vrot.slane %v2035, 3
        %v2070 = vor.u32 %v2068, %v2069
        %v2071 = vsel %vm480, %v2067, %v2070
        %v2074 = vrot.slane %v2025, 3
        %v2075 = vrot.slane %v2026, 3
        %v2076 = vsel %vm490, %v2074, %v2075
        %v2079 = vrot.slane %v2028, 3
        %v2080 = vrot.slane %v2030, 4
        %v2081 = vor.u32 %v2079, %v2080
        %v2082 = vrot.slane %v2039, 3
        %v2083 = vrot.slane %v2035, 4
        %v2084 = vor.u32 %v2082, %v2083
        %v2085 = vsel %vm496, %v2081, %v2084
        %v2088 = vld [vmem:[%s5] sm:$0xf]
        %v2089 = vld [vmem:[%s5 + $0x4] sm:$0xf]
        %v2090 = vld [vmem:[%s5 + $0x8] sm:$0xf]
        %v2091 = vld [vmem:[%s5 + $0xc] sm:$0xf]
        %v2092 = vld [vmem:[%s5 + $0x10] sm:$0xf]
        %v2093 = vld [vmem:[%s5 + $0x14] sm:$0xf]
        %v2094 = vld [vmem:[%s5 + $0x18] sm:$0xf]
        %v2095 = vld [vmem:[%s5 + $0x1c] sm:$0xf]
        %v2096 = vld [vmem:[%s5 + $0x20] sm:$0xf]
        %v2097 = vld [vmem:[%s5 + $0x24] sm:$0xf]
        %v2098 = vld [vmem:[%s5 + $0x28] sm:$0xf]
        %v2099 = vld [vmem:[%s5 + $0x2c] sm:$0xf]
        %v2100 = vld [vmem:[%s5 + $0x30] sm:$0xf]
        %v2101 = vld [vmem:[%s5 + $0x34] sm:$0xf]
        %v2102 = vld [vmem:[%s5 + $0x38] sm:$0xf]
        %v2103 = vld [vmem:[%s5 + $0x3c] sm:$0xf]
        %v2104 = vld [vmem:[%s5 + $0x40] sm:$0xf]
        %v2105 = vld [vmem:[%s5 + $0x44] sm:$0xf]
        %v2106 = vld [vmem:[%s5 + $0x48] sm:$0xf]
        %v2107 = vld [vmem:[%s5 + $0x4c] sm:$0xf]
        %v2108 = vld [vmem:[%s5 + $0x50] sm:$0xf]
        %v2109 = vld [vmem:[%s5 + $0x54] sm:$0xf]
        %v2110 = vld [vmem:[%s5 + $0x58] sm:$0xf]
        %v2111 = vld [vmem:[%s5 + $0x5c] sm:$0xf]
        %v2112 = vld [vmem:[%s5 + $0x60] sm:$0xf]
        %v2113 = vld [vmem:[%s5 + $0x64] sm:$0xf]
        %v2114 = vld [vmem:[%s5 + $0x68] sm:$0xf]
        %v2115 = vld [vmem:[%s5 + $0x6c] sm:$0xf]
        %v2116 = vld [vmem:[%s5 + $0x70] sm:$0xf]
        %v2117 = vld [vmem:[%s5 + $0x74] sm:$0xf]
        %v2118 = vld [vmem:[%s5 + $0x78] sm:$0xf]
        %v2119 = vld [vmem:[%s5 + $0x7c] sm:$0xf]
        %v2120 = vld [vmem:[%s5 + $0x80] sm:$0xf]
        %v2121 = vld [vmem:[%s5 + $0x84] sm:$0xf]
        %v2122 = vld [vmem:[%s5 + $0x88] sm:$0xf]
        %v2123 = vld [vmem:[%s5 + $0x8c] sm:$0xf]
        %v2124 = vld [vmem:[%s5 + $0x90] sm:$0xf]
        %v2125 = vld [vmem:[%s5 + $0x94] sm:$0xf]
        %v2126 = vld [vmem:[%s5 + $0x98] sm:$0xf]
        %v2127 = vld [vmem:[%s5 + $0x9c] sm:$0xf]
        %v2128 = vld [vmem:[%s5 + $0xa0] sm:$0xf]
        %v2129 = vld [vmem:[%s5 + $0xa4] sm:$0xf]
        %v2130 = vld [vmem:[%s5 + $0xa8] sm:$0xf]
        %v2131 = vld [vmem:[%s5 + $0xac] sm:$0xf]
        %v2132 = vld [vmem:[%s5 + $0xb0] sm:$0xf]
        %v2133 = vld [vmem:[%s5 + $0xb4] sm:$0xf]
        %v2134 = vld [vmem:[%s5 + $0xb8] sm:$0xf]
        %v2135 = vld [vmem:[%s5 + $0xbc] sm:$0xf]
        %v2136 = vld [vmem:[%s5 + $0xc0] sm:$0xf]
        %v2137 = vld [vmem:[%s5 + $0xc4] sm:$0xf]
        %v2138 = vld [vmem:[%s5 + $0xc8] sm:$0xf]
        %v2139 = vld [vmem:[%s5 + $0xcc] sm:$0xf]
        %v2140 = vld [vmem:[%s5 + $0xd0] sm:$0xf]
        %v2141 = vld [vmem:[%s5 + $0xd4] sm:$0xf]
        %v2142 = vld [vmem:[%s5 + $0xd8] sm:$0xf]
        %v2143 = vld [vmem:[%s5 + $0xdc] sm:$0xf]
        %v2144 = vld [vmem:[%s5 + $0xe0] sm:$0xf]
        %v2145 = vld [vmem:[%s5 + $0xe4] sm:$0xf]
        %v2146 = vld [vmem:[%s5 + $0xe8] sm:$0xf]
        %v2147 = vld [vmem:[%s5 + $0xec] sm:$0xf]
        %v2148 = vld [vmem:[%s5 + $0xf0] sm:$0xf]
        %v2149 = vld [vmem:[%s5 + $0xf4] sm:$0xf]
        %v2150 = vld [vmem:[%s5 + $0xf8] sm:$0xf]
        %v2151 = vld [vmem:[%s5 + $0xfc] sm:$0xf]
        %v2152 = vld [vmem:[%s5 + $0x100] sm:$0xf]
        %v2153 = vld [vmem:[%s5 + $0x104] sm:$0xf]
        %v2154 = vld [vmem:[%s5 + $0x108] sm:$0xf]
        %v2155 = vld [vmem:[%s5 + $0x10c] sm:$0xf]
        %v2156 = vld [vmem:[%s5 + $0x110] sm:$0xf]
        %v2157 = vld [vmem:[%s5 + $0x114] sm:$0xf]
        %v2158 = vld [vmem:[%s5 + $0x118] sm:$0xf]
        %v2159 = vld [vmem:[%s5 + $0x11c] sm:$0xf]
        %v2160 = vld [vmem:[%s5 + $0x120] sm:$0xf]
        %v2161 = vld [vmem:[%s5 + $0x124] sm:$0xf]
        %v2162 = vld [vmem:[%s5 + $0x128] sm:$0xf]
        %v2163 = vld [vmem:[%s5 + $0x12c] sm:$0xf]
        %v2164 = vld [vmem:[%s5 + $0x130] sm:$0xf]
        %v2165 = vld [vmem:[%s5 + $0x134] sm:$0xf]
        %v2166 = vld [vmem:[%s5 + $0x138] sm:$0xf]
        %v2167 = vld [vmem:[%s5 + $0x13c] sm:$0xf]
        %v2168 = vld [vmem:[%s5 + $0x140] sm:$0xf]
        %v2169 = vld [vmem:[%s5 + $0x144] sm:$0xf]
        %v2170 = vld [vmem:[%s5 + $0x148] sm:$0xf]
        %v2171 = vld [vmem:[%s5 + $0x14c] sm:$0xf]
        %v2172 = vld [vmem:[%s5 + $0x150] sm:$0xf]
        %v2173 = vld [vmem:[%s5 + $0x154] sm:$0xf]
        %v2174 = vld [vmem:[%s5 + $0x158] sm:$0xf]
        %v2175 = vld [vmem:[%s5 + $0x15c] sm:$0xf]
        %v2176 = vld [vmem:[%s5 + $0x160] sm:$0xf]
        %v2177 = vld [vmem:[%s5 + $0x164] sm:$0xf]
        %v2178 = vld [vmem:[%s5 + $0x168] sm:$0xf]
        %v2179 = vld [vmem:[%s5 + $0x16c] sm:$0xf]
        %v2180 = vld [vmem:[%s5 + $0x170] sm:$0xf]
        %v2181 = vld [vmem:[%s5 + $0x174] sm:$0xf]
        %v2182 = vld [vmem:[%s5 + $0x178] sm:$0xf]
        %v2183 = vld [vmem:[%s5 + $0x17c] sm:$0xf]
        %v2184 = vld [vmem:[%s5 + $0x180] sm:$0xf]
        %v2185 = vld [vmem:[%s5 + $0x184] sm:$0xf]
        %v2186 = vld [vmem:[%s5 + $0x188] sm:$0xf]
        %v2187 = vld [vmem:[%s5 + $0x18c] sm:$0xf]
        %v2188 = vld [vmem:[%s5 + $0x190] sm:$0xf]
        %v2189 = vld [vmem:[%s5 + $0x194] sm:$0xf]
        %v2190 = vld [vmem:[%s5 + $0x198] sm:$0xf]
        %v2191 = vld [vmem:[%s5 + $0x19c] sm:$0xf]
        %v2192 = vld [vmem:[%s5 + $0x1a0] sm:$0xf]
        %v2193 = vld [vmem:[%s5 + $0x1a4] sm:$0xf]
        %v2194 = vld [vmem:[%s5 + $0x1a8] sm:$0xf]
        %v2195 = vld [vmem:[%s5 + $0x1ac] sm:$0xf]
        %v2196 = vld [vmem:[%s5 + $0x1b0] sm:$0xf]
        %v2197 = vld [vmem:[%s5 + $0x1b4] sm:$0xf]
        %v2198 = vld [vmem:[%s5 + $0x1b8] sm:$0xf]
        %v2199 = vld [vmem:[%s5 + $0x1bc] sm:$0xf]
        %v2200 = vld [vmem:[%s5 + $0x1c0] sm:$0xf]
        %v2201 = vld [vmem:[%s5 + $0x1c4] sm:$0xf]
        %v2202 = vld [vmem:[%s5 + $0x1c8] sm:$0xf]
        %v2203 = vld [vmem:[%s5 + $0x1cc] sm:$0xf]
        %v2204 = vld [vmem:[%s5 + $0x1d0] sm:$0xf]
        %v2205 = vld [vmem:[%s5 + $0x1d4] sm:$0xf]
        %v2206 = vld [vmem:[%s5 + $0x1d8] sm:$0xf]
        %v2207 = vld [vmem:[%s5 + $0x1dc] sm:$0xf]
        %v2208 = vld [vmem:[%s5 + $0x1e0] sm:$0xf]
        %v2209 = vld [vmem:[%s5 + $0x1e4] sm:$0xf]
        %v2210 = vld [vmem:[%s5 + $0x1e8] sm:$0xf]
        %v2211 = vld [vmem:[%s5 + $0x1ec] sm:$0xf]
        %v2212 = vld [vmem:[%s5 + $0x1f0] sm:$0xf]
        %v2213 = vld [vmem:[%s5 + $0x1f4] sm:$0xf]
        %v2214 = vld [vmem:[%s5 + $0x1f8] sm:$0xf]
        %v2215 = vld [vmem:[%s5 + $0x1fc] sm:$0xf]
        %v2216 = vld [vmem:[%s6] sm:$0x1]
        %v2218 = vlaneseq
        %v2219 = vshrl.u32 %v2218, 7
        %v2220 = vsub.s32 0, %v2219
        %v2221 = vrot.slane %v2216, %v2220
        %v2351 = vunpack.c.l.b16 %v2088
        %v2352 = vunpack.c.l.b16 %v2089
        %v2353 = vunpack.c.l.b16 %v2090
        %v2354 = vunpack.c.l.b16 %v2091
        %v2355 = vunpack.c.l.b16 %v2092
        %v2356 = vunpack.c.l.b16 %v2093
        %v2357 = vunpack.c.l.b16 %v2094
        %v2358 = vunpack.c.l.b16 %v2095
        %v2359 = vunpack.c.l.b16 %v2096
        %v2360 = vunpack.c.l.b16 %v2097
        %v2361 = vunpack.c.l.b16 %v2098
        %v2362 = vunpack.c.l.b16 %v2099
        %v2363 = vunpack.c.l.b16 %v2100
        %v2364 = vunpack.c.l.b16 %v2101
        %v2365 = vunpack.c.l.b16 %v2102
        %v2366 = vunpack.c.l.b16 %v2103
        %v2367 = vunpack.c.l.b16 %v2104
        %v2368 = vunpack.c.l.b16 %v2105
        %v2369 = vunpack.c.l.b16 %v2106
        %v2370 = vunpack.c.l.b16 %v2107
        %v2371 = vunpack.c.l.b16 %v2108
        %v2372 = vunpack.c.l.b16 %v2109
        %v2373 = vunpack.c.l.b16 %v2110
        %v2374 = vunpack.c.l.b16 %v2111
        %v2375 = vunpack.c.l.b16 %v2112
        %v2376 = vunpack.c.l.b16 %v2113
        %v2377 = vunpack.c.l.b16 %v2114
        %v2378 = vunpack.c.l.b16 %v2115
        %v2379 = vunpack.c.l.b16 %v2116
        %v2380 = vunpack.c.l.b16 %v2117
        %v2381 = vunpack.c.l.b16 %v2118
        %v2382 = vunpack.c.l.b16 %v2119
        %v2383 = vunpack.c.l.b16 %v2120
        %v2384 = vunpack.c.l.b16 %v2121
        %v2385 = vunpack.c.l.b16 %v2122
        %v2386 = vunpack.c.l.b16 %v2123
        %v2387 = vunpack.c.l.b16 %v2124
        %v2388 = vunpack.c.l.b16 %v2125
        %v2389 = vunpack.c.l.b16 %v2126
        %v2390 = vunpack.c.l.b16 %v2127
        %v2391 = vunpack.c.l.b16 %v2128
        %v2392 = vunpack.c.l.b16 %v2129
        %v2393 = vunpack.c.l.b16 %v2130
        %v2394 = vunpack.c.l.b16 %v2131
        %v2395 = vunpack.c.l.b16 %v2132
        %v2396 = vunpack.c.l.b16 %v2133
        %v2397 = vunpack.c.l.b16 %v2134
        %v2398 = vunpack.c.l.b16 %v2135
        %v2399 = vunpack.c.l.b16 %v2136
        %v2400 = vunpack.c.l.b16 %v2137
        %v2401 = vunpack.c.l.b16 %v2138
        %v2402 = vunpack.c.l.b16 %v2139
        %v2403 = vunpack.c.l.b16 %v2140
        %v2404 = vunpack.c.l.b16 %v2141
        %v2405 = vunpack.c.l.b16 %v2142
        %v2406 = vunpack.c.l.b16 %v2143
        %v2407 = vunpack.c.l.b16 %v2144
        %v2408 = vunpack.c.l.b16 %v2145
        %v2409 = vunpack.c.l.b16 %v2146
        %v2410 = vunpack.c.l.b16 %v2147
        %v2411 = vunpack.c.l.b16 %v2148
        %v2412 = vunpack.c.l.b16 %v2149
        %v2413 = vunpack.c.l.b16 %v2150
        %v2414 = vunpack.c.l.b16 %v2151
        %v2415 = vunpack.c.l.b16 %v2152
        %v2416 = vunpack.c.l.b16 %v2153
        %v2417 = vunpack.c.l.b16 %v2154
        %v2418 = vunpack.c.l.b16 %v2155
        %v2419 = vunpack.c.l.b16 %v2156
        %v2420 = vunpack.c.l.b16 %v2157
        %v2421 = vunpack.c.l.b16 %v2158
        %v2422 = vunpack.c.l.b16 %v2159
        %v2423 = vunpack.c.l.b16 %v2160
        %v2424 = vunpack.c.l.b16 %v2161
        %v2425 = vunpack.c.l.b16 %v2162
        %v2426 = vunpack.c.l.b16 %v2163
        %v2427 = vunpack.c.l.b16 %v2164
        %v2428 = vunpack.c.l.b16 %v2165
        %v2429 = vunpack.c.l.b16 %v2166
        %v2430 = vunpack.c.l.b16 %v2167
        %v2431 = vunpack.c.l.b16 %v2168
        %v2432 = vunpack.c.l.b16 %v2169
        %v2433 = vunpack.c.l.b16 %v2170
        %v2434 = vunpack.c.l.b16 %v2171
        %v2435 = vunpack.c.l.b16 %v2172
        %v2436 = vunpack.c.l.b16 %v2173
        %v2437 = vunpack.c.l.b16 %v2174
        %v2438 = vunpack.c.l.b16 %v2175
        %v2439 = vunpack.c.l.b16 %v2176
        %v2440 = vunpack.c.l.b16 %v2177
        %v2441 = vunpack.c.l.b16 %v2178
        %v2442 = vunpack.c.l.b16 %v2179
        %v2443 = vunpack.c.l.b16 %v2180
        %v2444 = vunpack.c.l.b16 %v2181
        %v2445 = vunpack.c.l.b16 %v2182
        %v2446 = vunpack.c.l.b16 %v2183
        %v2447 = vunpack.c.l.b16 %v2184
        %v2448 = vunpack.c.l.b16 %v2185
        %v2449 = vunpack.c.l.b16 %v2186
        %v2450 = vunpack.c.l.b16 %v2187
        %v2451 = vunpack.c.l.b16 %v2188
        %v2452 = vunpack.c.l.b16 %v2189
        %v2453 = vunpack.c.l.b16 %v2190
        %v2454 = vunpack.c.l.b16 %v2191
        %v2455 = vunpack.c.l.b16 %v2192
        %v2456 = vunpack.c.l.b16 %v2193
        %v2457 = vunpack.c.l.b16 %v2194
        %v2458 = vunpack.c.l.b16 %v2195
        %v2459 = vunpack.c.l.b16 %v2196
        %v2460 = vunpack.c.l.b16 %v2197
        %v2461 = vunpack.c.l.b16 %v2198
        %v2462 = vunpack.c.l.b16 %v2199
        %v2463 = vunpack.c.l.b16 %v2200
        %v2464 = vunpack.c.l.b16 %v2201
        %v2465 = vunpack.c.l.b16 %v2202
        %v2466 = vunpack.c.l.b16 %v2203
        %v2467 = vunpack.c.l.b16 %v2204
        %v2468 = vunpack.c.l.b16 %v2205
        %v2469 = vunpack.c.l.b16 %v2206
        %v2470 = vunpack.c.l.b16 %v2207
        %v2471 = vunpack.c.l.b16 %v2208
        %v2472 = vunpack.c.l.b16 %v2209
        %v2473 = vunpack.c.l.b16 %v2210
        %v2474 = vunpack.c.l.b16 %v2211
        %v2475 = vunpack.c.l.b16 %v2212
        %v2476 = vunpack.c.l.b16 %v2213
        %v2477 = vunpack.c.l.b16 %v2214
        %v2478 = vunpack.c.l.b16 %v2215
        %v2479 = vpack.c.b16 %v2352, %v2351
        %v2480 = vpack.c.b16 %v2354, %v2353
        %v2481 = vpack.c.b16 %v2356, %v2355
        %v2482 = vpack.c.b16 %v2358, %v2357
        %v2483 = vpack.c.b16 %v2360, %v2359
        %v2484 = vpack.c.b16 %v2362, %v2361
        %v2485 = vpack.c.b16 %v2364, %v2363
        %v2486 = vpack.c.b16 %v2366, %v2365
        %v2487 = vpack.c.b16 %v2368, %v2367
        %v2488 = vpack.c.b16 %v2370, %v2369
        %v2489 = vpack.c.b16 %v2372, %v2371
        %v2490 = vpack.c.b16 %v2374, %v2373
        %v2491 = vpack.c.b16 %v2376, %v2375
        %v2492 = vpack.c.b16 %v2378, %v2377
        %v2493 = vpack.c.b16 %v2380, %v2379
        %v2494 = vpack.c.b16 %v2382, %v2381
        %v2495 = vpack.c.b16 %v2384, %v2383
        %v2496 = vpack.c.b16 %v2386, %v2385
        %v2497 = vpack.c.b16 %v2388, %v2387
        %v2498 = vpack.c.b16 %v2390, %v2389
        %v2499 = vpack.c.b16 %v2392, %v2391
        %v2500 = vpack.c.b16 %v2394, %v2393
        %v2501 = vpack.c.b16 %v2396, %v2395
        %v2502 = vpack.c.b16 %v2398, %v2397
        %v2503 = vpack.c.b16 %v2400, %v2399
        %v2504 = vpack.c.b16 %v2402, %v2401
        %v2505 = vpack.c.b16 %v2404, %v2403
        %v2506 = vpack.c.b16 %v2406, %v2405
        %v2507 = vpack.c.b16 %v2408, %v2407
        %v2508 = vpack.c.b16 %v2410, %v2409
        %v2509 = vpack.c.b16 %v2412, %v2411
        %v2510 = vpack.c.b16 %v2414, %v2413
        %v2511 = vpack.c.b16 %v2416, %v2415
        %v2512 = vpack.c.b16 %v2418, %v2417
        %v2513 = vpack.c.b16 %v2420, %v2419
        %v2514 = vpack.c.b16 %v2422, %v2421
        %v2515 = vpack.c.b16 %v2424, %v2423
        %v2516 = vpack.c.b16 %v2426, %v2425
        %v2517 = vpack.c.b16 %v2428, %v2427
        %v2518 = vpack.c.b16 %v2430, %v2429
        %v2519 = vpack.c.b16 %v2432, %v2431
        %v2520 = vpack.c.b16 %v2434, %v2433
        %v2521 = vpack.c.b16 %v2436, %v2435
        %v2522 = vpack.c.b16 %v2438, %v2437
        %v2523 = vpack.c.b16 %v2440, %v2439
        %v2524 = vpack.c.b16 %v2442, %v2441
        %v2525 = vpack.c.b16 %v2444, %v2443
        %v2526 = vpack.c.b16 %v2446, %v2445
        %v2527 = vpack.c.b16 %v2448, %v2447
        %v2528 = vpack.c.b16 %v2450, %v2449
        %v2529 = vpack.c.b16 %v2452, %v2451
        %v2530 = vpack.c.b16 %v2454, %v2453
        %v2531 = vpack.c.b16 %v2456, %v2455
        %v2532 = vpack.c.b16 %v2458, %v2457
        %v2533 = vpack.c.b16 %v2460, %v2459
        %v2534 = vpack.c.b16 %v2462, %v2461
        %v2535 = vpack.c.b16 %v2464, %v2463
        %v2536 = vpack.c.b16 %v2466, %v2465
        %v2537 = vpack.c.b16 %v2468, %v2467
        %v2538 = vpack.c.b16 %v2470, %v2469
        %v2539 = vpack.c.b16 %v2472, %v2471
        %v2540 = vpack.c.b16 %v2474, %v2473
        %v2541 = vpack.c.b16 %v2476, %v2475
        %v2542 = vpack.c.b16 %v2478, %v2477
        %2607 = vmatprep.subr.bf16.mxu0 0
        %2608 = vmatpush1.bf16.msra.mxu0 %v2479
        %2609 = vmatprep.subr.bf16.mxu0 0
        %2610 = vmatpush1.bf16.msra.mxu0 %v2480
        %2611 = vmatprep.subr.bf16.mxu0 0
        %2612 = vmatpush1.bf16.msra.mxu0 %v2481
        %2613 = vmatprep.subr.bf16.mxu0 0
        %2614 = vmatpush1.bf16.msra.mxu0 %v2482
        %2615 = vmatprep.subr.bf16.mxu0 0
        %2616 = vmatpush1.bf16.msra.mxu0 %v2483
        %2617 = vmatprep.subr.bf16.mxu0 0
        %2618 = vmatpush1.bf16.msra.mxu0 %v2484
        %2619 = vmatprep.subr.bf16.mxu0 0
        %2620 = vmatpush1.bf16.msra.mxu0 %v2485
        %2621 = vmatprep.subr.bf16.mxu0 0
        %2622 = vmatpush1.bf16.msra.mxu0 %v2486
        %2623 = vmatprep.subr.bf16.mxu0 0
        %2624 = vmatpush1.bf16.msra.mxu0 %v2487
        %2625 = vmatprep.subr.bf16.mxu0 0
        %2626 = vmatpush1.bf16.msra.mxu0 %v2488
        %2627 = vmatprep.subr.bf16.mxu0 0
        %2628 = vmatpush1.bf16.msra.mxu0 %v2489
        %2629 = vmatprep.subr.bf16.mxu0 0
        %2630 = vmatpush1.bf16.msra.mxu0 %v2490
        %2631 = vmatprep.subr.bf16.mxu0 0
        %2632 = vmatpush1.bf16.msra.mxu0 %v2491
        %2633 = vmatprep.subr.bf16.mxu0 0
        %2634 = vmatpush1.bf16.msra.mxu0 %v2492
        %2635 = vmatprep.subr.bf16.mxu0 0
        %2636 = vmatpush1.bf16.msra.mxu0 %v2493
        %2637 = vmatprep.subr.bf16.mxu0 0
        %2638 = vmatpush1.bf16.msra.mxu0 %v2494
        %2639 = vmatprep.mubr.bf16.mxu0 %v2038
        %2640 = vmatmul.mubr.bf16.gmra.mrb[0].mxu0 %v2025
        %v2641 = vpop.f32.mrb[0].mxu0
        %v2642 = vadd.f32 %v2221, %v2641
        %v2643 = vpop.f32.mrb[0].mxu0
        %v2644 = vpop.f32.mrb[0].mxu0
        %v2645 = vadd.f32 %v2221, %v2644
        %v2646 = vpop.f32.mrb[0].mxu0
        %2647 = vmatprep.mubr.bf16.mxu0 %v2041
        %2648 = vmatmul.mubr.bf16.gmra.mrb[0].mxu0 %v2026
        %v2649 = vpop.f32.mrb[0].mxu0
        %v2650 = vadd.f32 %v2221, %v2649
        %v2651 = vpop.f32.mrb[0].mxu0
        %v2652 = vpop.f32.mrb[0].mxu0
        %v2653 = vpop.f32.mrb[0].mxu0
        %2654 = vdwg.mxu0
        %2655 = vmatprep.subr.bf16.mxu0 0
        %2656 = vmatpush1.bf16.msra.mxu0 %v2495
        %2657 = vmatprep.subr.bf16.mxu0 0
        %2658 = vmatpush1.bf16.msra.mxu0 %v2496
        %2659 = vmatprep.subr.bf16.mxu0 0
        %2660 = vmatpush1.bf16.msra.mxu0 %v2497
        %2661 = vmatprep.subr.bf16.mxu0 0
        %2662 = vmatpush1.bf16.msra.mxu0 %v2498
        %2663 = vmatprep.subr.bf16.mxu0 0
        %2664 = vmatpush1.bf16.msra.mxu0 %v2499
        %2665 = vmatprep.subr.bf16.mxu0 0
        %2666 = vmatpush1.bf16.msra.mxu0 %v2500
        %2667 = vmatprep.subr.bf16.mxu0 0
        %2668 = vmatpush1.bf16.msra.mxu0 %v2501
        %2669 = vmatprep.subr.bf16.mxu0 0
        %2670 = vmatpush1.bf16.msra.mxu0 %v2502
        %2671 = vmatprep.subr.bf16.mxu0 0
        %2672 = vmatpush1.bf16.msra.mxu0 %v2503
        %2673 = vmatprep.subr.bf16.mxu0 0
        %2674 = vmatpush1.bf16.msra.mxu0 %v2504
        %2675 = vmatprep.subr.bf16.mxu0 0
        %2676 = vmatpush1.bf16.msra.mxu0 %v2505
        %2677 = vmatprep.subr.bf16.mxu0 0
        %2678 = vmatpush1.bf16.msra.mxu0 %v2506
        %2679 = vmatprep.subr.bf16.mxu0 0
        %2680 = vmatpush1.bf16.msra.mxu0 %v2507
        %2681 = vmatprep.subr.bf16.mxu0 0
        %2682 = vmatpush1.bf16.msra.mxu0 %v2508
        %2683 = vmatprep.subr.bf16.mxu0 0
        %2684 = vmatpush1.bf16.msra.mxu0 %v2509
        %2685 = vmatprep.subr.bf16.mxu0 0
        %2686 = vmatpush1.bf16.msra.mxu0 %v2510
        %2687 = vmatprep.mubr.bf16.mxu0 %v2057
        %2688 = vmatmul.mubr.bf16.gmra.mrb[0].mxu0 %v2048
        %v2689 = vpop.f32.mrb[0].mxu0
        %v2690 = vadd.f32 %v2642, %v2689
        %v2691 = vpop.f32.mrb[0].mxu0
        %v2692 = vpop.f32.mrb[0].mxu0
        %v2693 = vadd.f32 %v2645, %v2692
        %v2694 = vpop.f32.mrb[0].mxu0
        %2695 = vmatprep.mubr.bf16.mxu0 %v2056
        %2696 = vmatmul.mubr.bf16.gmra.mrb[0].mxu0 %v2047
        %v2697 = vpop.f32.mrb[0].mxu0
        %v2698 = vadd.f32 %v2650, %v2697
        %v2699 = vpop.f32.mrb[0].mxu0
        %v2700 = vpop.f32.mrb[0].mxu0
        %v2701 = vpop.f32.mrb[0].mxu0
        %2702 = vdwg.mxu0
        %2703 = vmatprep.subr.bf16.mxu0 0
        %2704 = vmatpush1.bf16.msra.mxu0 %v2511
        %2705 = vmatprep.subr.bf16.mxu0 0
        %2706 = vmatpush1.bf16.msra.mxu0 %v2512
        %2707 = vmatprep.subr.bf16.mxu0 0
        %2708 = vmatpush1.bf16.msra.mxu0 %v2513
        %2709 = vmatprep.subr.bf16.mxu0 0
        %2710 = vmatpush1.bf16.msra.mxu0 %v2514
        %2711 = vmatprep.subr.bf16.mxu0 0
        %2712 = vmatpush1.bf16.msra.mxu0 %v2515
        %2713 = vmatprep.subr.bf16.mxu0 0
        %2714 = vmatpush1.bf16.msra.mxu0 %v2516
        %2715 = vmatprep.subr.bf16.mxu0 0
        %2716 = vmatpush1.bf16.msra.mxu0 %v2517
        %2717 = vmatprep.subr.bf16.mxu0 0
        %2718 = vmatpush1.bf16.msra.mxu0 %v2518
        %2719 = vmatprep.subr.bf16.mxu0 0
        %2720 = vmatpush1.bf16.msra.mxu0 %v2519
        %2721 = vmatprep.subr.bf16.mxu0 0
        %2722 = vmatpush1.bf16.msra.mxu0 %v2520
        %2723 = vmatprep.subr.bf16.mxu0 0
        %2724 = vmatpush1.bf16.msra.mxu0 %v2521
        %2725 = vmatprep.subr.bf16.mxu0 0
        %2726 = vmatpush1.bf16.msra.mxu0 %v2522
        %2727 = vmatprep.subr.bf16.mxu0 0
        %2728 = vmatpush1.bf16.msra.mxu0 %v2523
        %2729 = vmatprep.subr.bf16.mxu0 0
        %2730 = vmatpush1.bf16.msra.mxu0 %v2524
        %2731 = vmatprep.subr.bf16.mxu0 0
        %2732 = vmatpush1.bf16.msra.mxu0 %v2525
        %2733 = vmatprep.subr.bf16.mxu0 0
        %2734 = vmatpush1.bf16.msra.mxu0 %v2526
        %2735 = vmatprep.mubr.bf16.mxu0 %v2071
        %2736 = vmatmul.mubr.bf16.gmra.mrb[0].mxu0 %v2062
        %v2737 = vpop.f32.mrb[0].mxu0
        %v2738 = vadd.f32 %v2690, %v2737
        %v2739 = vpop.f32.mrb[0].mxu0
        %v2740 = vpop.f32.mrb[0].mxu0
        %v2741 = vadd.f32 %v2693, %v2740
        %v2742 = vpop.f32.mrb[0].mxu0
        %2743 = vmatprep.mubr.bf16.mxu0 %v2070
        %2744 = vmatmul.mubr.bf16.gmra.mrb[0].mxu0 %v2061
        %v2745 = vpop.f32.mrb[0].mxu0
        %v2746 = vadd.f32 %v2698, %v2745
        %v2747 = vpop.f32.mrb[0].mxu0
        %v2748 = vpop.f32.mrb[0].mxu0
        %v2749 = vpop.f32.mrb[0].mxu0
        %2750 = vdwg.mxu0
        %2751 = vmatprep.subr.bf16.mxu0 0
        %2752 = vmatpush1.bf16.msra.mxu0 %v2527
        %2753 = vmatprep.subr.bf16.mxu0 0
        %2754 = vmatpush1.bf16.msra.mxu0 %v2528
        %2755 = vmatprep.subr.bf16.mxu0 0
        %2756 = vmatpush1.bf16.msra.mxu0 %v2529
        %2757 = vmatprep.subr.bf16.mxu0 0
        %2758 = vmatpush1.bf16.msra.mxu0 %v2530
        %2759 = vmatprep.subr.bf16.mxu0 0
        %2760 = vmatpush1.bf16.msra.mxu0 %v2531
        %2761 = vmatprep.subr.bf16.mxu0 0
        %2762 = vmatpush1.bf16.msra.mxu0 %v2532
        %2763 = vmatprep.subr.bf16.mxu0 0
        %2764 = vmatpush1.bf16.msra.mxu0 %v2533
        %2765 = vmatprep.subr.bf16.mxu0 0
        %2766 = vmatpush1.bf16.msra.mxu0 %v2534
        %2767 = vmatprep.subr.bf16.mxu0 0
        %2768 = vmatpush1.bf16.msra.mxu0 %v2535
        %2769 = vmatprep.subr.bf16.mxu0 0
        %2770 = vmatpush1.bf16.msra.mxu0 %v2536
        %2771 = vmatprep.subr.bf16.mxu0 0
        %2772 = vmatpush1.bf16.msra.mxu0 %v2537
        %2773 = vmatprep.subr.bf16.mxu0 0
        %2774 = vmatpush1.bf16.msra.mxu0 %v2538
        %2775 = vmatprep.subr.bf16.mxu0 0
        %2776 = vmatpush1.bf16.msra.mxu0 %v2539
        %2777 = vmatprep.subr.bf16.mxu0 0
        %2778 = vmatpush1.bf16.msra.mxu0 %v2540
        %2779 = vmatprep.subr.bf16.mxu0 0
        %2780 = vmatpush1.bf16.msra.mxu0 %v2541
        %2781 = vmatprep.subr.bf16.mxu0 0
        %2782 = vmatpush1.bf16.msra.mxu0 %v2542
        %2783 = vmatprep.mubr.bf16.mxu0 %v2085
        %2784 = vmatmul.mubr.bf16.gmra.mrb[0].mxu0 %v2076
        %v2785 = vpop.f32.mrb[0].mxu0
        %v2786 = vadd.f32 %v2738, %v2785
        %v2787 = vpop.f32.mrb[0].mxu0
        %v2788 = vpop.f32.mrb[0].mxu0
        %v2789 = vadd.f32 %v2741, %v2788
        %v2790 = vpop.f32.mrb[0].mxu0
        %2791 = vmatprep.mubr.bf16.mxu0 %v2084
        %2792 = vmatmul.mubr.bf16.gmra.mrb[0].mxu0 %v2075
        %v2793 = vpop.f32.mrb[0].mxu0
        %v2794 = vadd.f32 %v2746, %v2793
        %v2795 = vpop.f32.mrb[0].mxu0
        %v2796 = vpop.f32.mrb[0].mxu0
        %v2797 = vpop.f32.mrb[0].mxu0
        %2798 = vdwg.mxu0
        %v2799 = vmax.f32 %v2786, 0.0
        %v2800 = vmax.f32 %v2789, 0.0
        %v2801 = vmax.f32 %v2794, 0.0
        %vm2802 = vcmask 1042432
        %v2803 = vsel %vm2802, %v2801, -inf
        %v2804 = vmax.f32 %v2799, %v2800
        %v2805 = vmax.f32 %v2804, %v2803
        %v2806 = vrot.slane %v2805, 4
        %v2807 = vmax.f32 %v2805, %v2806
        %v2808 = vrot.slane %v2807, 2
        %v2809 = vmax.f32 %v2807, %v2808
        %v2810 = vrot.slane %v2809, 1
        %v2811 = vmax.f32 %v2809, %v2810
        %2812 = vst [vmem:[%s270] sm:$0x1] %v2811
        %s2813 = sand.u32 %s181, 1
        %s2814 = scalar_lea.sflag [#allocation3], %s2813
        %s2815 = sand.u32 %s181, 1
        %s2816 = scalar_lea.vmem [#allocation2], %s2815
        // Predicated region
        $region49: #{conv_encoder_forward.1} parent=47 // pred_check
          %p2817 = pneg %p191
        $region50: #{conv_encoder_forward.1} parent=47 // pred_check_branch
          %2819 = sbr.rel (%p2817) target = $region52
        $region51: #{conv_encoder_forward.1} parent=47 // pred_region
          %s2821 = ssub.s32 16, 16
          %2822 = vsyncadd %s2814, %s2821
          %s2823 = smul.addr %s21, 16
          %s2824 = scalar_lea.hbm %s7, %s2823
          %s2826 = sshll.u32 %s2816, 4
          %s2827 = int_to_ptr.vmem [resolvable:$true] %s2826
          %2829 = dma.vmem_to_hbm [thread:$0]  %s2827, 16, %s2824, %s2814
        $region52: #{conv_encoder_forward.1} parent=47 // pred_fallthru
          _
      $region48: #{conv_encoder_forward.1} parent=5 // pred_fallthru
        _
      %p2830 = scmp.le.s32.totalorder 2, %s16
      // Predicated region
      $region53: #{conv_encoder_forward.1} parent=5 // pred_check
        %p2831 = pneg %p2830
      $region54: #{conv_encoder_forward.1} parent=5 // pred_check_branch
        %2833 = sbr.rel (%p2831) target = $region56
      $region55: #{conv_encoder_forward.1} parent=5 // pred_region
        %s2834 = ssub.s32 %s16, 2
        // Predicated region
        $region57: #{conv_encoder_forward.1} parent=55 // pred_check
          %p2835 = pneg %p197
        $region58: #{conv_encoder_forward.1} parent=55 // pred_check_branch
          %2837 = sbr.rel (%p2835) target = $region60
        $region59: #{conv_encoder_forward.1} parent=55 // pred_region
          %s2838 = sand.u32 %s182, 1
          %s2839 = scalar_lea.sflag [#allocation3], %s2838
          %s2840 = sand.u32 %s182, 1
          %s2841 = scalar_lea.vmem [#allocation2], %s2840
          %2842 = dma.done %s2839, 16
        $region60: #{conv_encoder_forward.1} parent=55 // pred_fallthru
          _
      $region56: #{conv_encoder_forward.1} parent=5 // pred_fallthru
        _
    $region6: #{conv_encoder_forward.1} parent=1 // loop_footer
      %s20 = sadd.s32 1, %s16
    $region7: #{conv_encoder_forward.1} parent=1 // loop_footer_branch
      %15 = sbr.rel target = $region3
    $region8: #{conv_encoder_forward.1} parent=1 // loop_exit
      _
    %2843 = vsyncpa [#allocation3], 1
    %s2844 = scalar_lea.sflag [#allocation3], 1
    %2845 = vsyncpa %s2844, 1

</llo_original>
